<compile_context>
chip_gen: v5e
topology: v5e:2x2
jax: 0.10.0
libtpu: 0.0.40
codegen_flags: <defaults>
</compile_context>

<pallas_src>
import jax
import jax.numpy as jnp
from jax.experimental import pallas as pl
from jax.experimental.pallas import tpu as pltpu

# ----------------------------- model config (small, synthetic) ----------------
VOCAB = 100
MAX_POS = 32
TYPE_VOCAB = 2
HIDDEN = 32
N_HEADS = 4
HEAD_DIM = HIDDEN // N_HEADS
INTERMEDIATE = 64
N_LAYERS = 2
NUM_CLASSES = 2
CLS_PAD = 128          # lane-dense padded logits width (sliced to NUM_CLASSES outside)
LN_EPS = 1e-12

_VMEM_SPEC = pl.BlockSpec(memory_space=pltpu.MemorySpace.VMEM)


# ----------------------------- fused whole-model kernel -----------------------
def _bert_fused_kernel(
    emb_ref, bias_ref,
    emb_ln_g_ref, emb_ln_b_ref,
    qkv_w_ref, qkv_b_ref, o_w_ref, o_b_ref,
    attn_ln_g_ref, attn_ln_b_ref,
    ffn_w1_ref, ffn_b1_ref, ffn_w2_ref, ffn_b2_ref,
    ffn_ln_g_ref, ffn_ln_b_ref,
    cls_w_ref, cls_b_ref,
    out_ref,
):
    B, S, _ = bias_ref.shape          # (B, S, S) additive mask bias
    BS, H = emb_ref.shape             # (B*S, H) summed embeddings

    def layer_norm(x, g, b):
        mu = jnp.mean(x, axis=-1, keepdims=True)
        d = x - mu
        var = jnp.mean(d * d, axis=-1, keepdims=True)
        return d * jax.lax.rsqrt(var + LN_EPS) * g + b

    def gelu(x):
        # TODO(synk): HF BERT uses the exact erf GELU; tanh approximation kept here
        # (known-good Mosaic lowering), differs from the erf form at ~1e-3.
        return 0.5 * x * (1.0 + jnp.tanh(0.7978845608028654 * (x + 0.044715 * x * x * x)))

    # ---- embedding LayerNorm (residual stream stays in vregs/VMEM from here on)
    h = layer_norm(emb_ref[...], emb_ln_g_ref[...], emb_ln_b_ref[...])   # (BS, H)

    # ---- additive attention-mask bias, loaded once and reused by every layer/head
    bias = bias_ref[...]                                                 # (B, S, S)

    for l in range(N_LAYERS):         # static unrolled loop over stacked weights
        # ----- fused QKV projection: single MXU pass; scale pre-folded into Q block
        qkv = (jnp.dot(h, qkv_w_ref[l], preferred_element_type=jnp.float32)
               + qkv_b_ref[l])                                           # (BS, 3H)
        o_w_l = o_w_ref[l]                                               # (H, H)

        # ----- multi-head attention: heads are lane slices, no HBM transposes.
        # Head-merge is fused into the output projection by accumulating
        # ctx_h @ o_w[rows of head h] (sublane-sliced weight rows).
        attn = jnp.zeros((BS, H), jnp.float32)
        for hd in range(N_HEADS):
            q_h = qkv[:, hd * HEAD_DIM:(hd + 1) * HEAD_DIM].reshape(B, S, HEAD_DIM)
            k_h = qkv[:, H + hd * HEAD_DIM:H + (hd + 1) * HEAD_DIM].reshape(B, S, HEAD_DIM)
            v_h = qkv[:, 2 * H + hd * HEAD_DIM:2 * H + (hd + 1) * HEAD_DIM].reshape(B, S, HEAD_DIM)

            s = jnp.einsum("bqd,bkd->bqk", q_h, k_h,
                           preferred_element_type=jnp.float32) + bias    # (B, S, S)
            m = jnp.max(s, axis=-1, keepdims=True)
            p = jnp.exp(s - m)
            p = p * pl.reciprocal(jnp.sum(p, axis=-1, keepdims=True), approx=True)
            c = jnp.einsum("bqk,bkd->bqd", p, v_h,
                           preferred_element_type=jnp.float32)           # (B, S, dH)

            attn = attn + jnp.dot(c.reshape(BS, HEAD_DIM),
                                  o_w_l[hd * HEAD_DIM:(hd + 1) * HEAD_DIM, :],
                                  preferred_element_type=jnp.float32)    # (BS, H)

        # ----- residual + LayerNorm fused as the attention epilogue
        h = layer_norm(h + attn + o_b_ref[l], attn_ln_g_ref[l], attn_ln_b_ref[l])

        # ----- FFN (GELU); residual + LayerNorm fused as the FFN epilogue
        inter = gelu(jnp.dot(h, ffn_w1_ref[l], preferred_element_type=jnp.float32)
                     + ffn_b1_ref[l])                                    # (BS, I)
        ffn = (jnp.dot(inter, ffn_w2_ref[l], preferred_element_type=jnp.float32)
               + ffn_b2_ref[l])                                          # (BS, H)
        h = layer_norm(h + ffn, ffn_ln_g_ref[l], ffn_ln_b_ref[l])

    # ---- classifier head: unmasked mean over sequence (torch.mean(dim=1)),
    # then linear into a lane-dense 128-wide padded output slab.
    pooled = jnp.mean(h.reshape(B, S, H), axis=1)                        # (B, H)
    out_ref[...] = (jnp.dot(pooled, cls_w_ref[...], preferred_element_type=jnp.float32)
                    + cls_b_ref[...])


# ----------------------------- parameter init / packing -----------------------
def init_params(key):
    def nrm(k, shape):
        return 0.02 * jax.random.normal(k, shape, jnp.float32)

    keys = iter(jax.random.split(key, 8 + N_LAYERS * 16))
    p = {
        "word_emb": nrm(next(keys), (VOCAB, HIDDEN)),
        "pos_emb": nrm(next(keys), (MAX_POS, HIDDEN)),
        "type_emb": nrm(next(keys), (TYPE_VOCAB, HIDDEN)),
        "emb_ln_g": jnp.ones((HIDDEN,), jnp.float32),
        "emb_ln_b": jnp.zeros((HIDDEN,), jnp.float32),
        "cls_w": nrm(next(keys), (HIDDEN, NUM_CLASSES)),
        "cls_b": jnp.zeros((NUM_CLASSES,), jnp.float32),
        "layers": [],
    }
    for _ in range(N_LAYERS):
        layer = {
            "q_w": nrm(next(keys), (HIDDEN, HIDDEN)),
            "q_b": jnp.zeros((HIDDEN,), jnp.float32),
            "k_w": nrm(next(keys), (HIDDEN, HIDDEN)),
            "k_b": jnp.zeros((HIDDEN,), jnp.float32),
            "v_w": nrm(next(keys), (HIDDEN, HIDDEN)),
            "v_b": jnp.zeros((HIDDEN,), jnp.float32),
            "o_w": nrm(next(keys), (HIDDEN, HIDDEN)),
            "o_b": jnp.zeros((HIDDEN,), jnp.float32),
            "attn_ln_g": jnp.ones((HIDDEN,), jnp.float32),
            "attn_ln_b": jnp.zeros((HIDDEN,), jnp.float32),
            "ffn_w1": nrm(next(keys), (HIDDEN, INTERMEDIATE)),
            "ffn_b1": jnp.zeros((INTERMEDIATE,), jnp.float32),
            "ffn_w2": nrm(next(keys), (INTERMEDIATE, HIDDEN)),
            "ffn_b2": jnp.zeros((HIDDEN,), jnp.float32),
            "ffn_ln_g": jnp.ones((HIDDEN,), jnp.float32),
            "ffn_ln_b": jnp.zeros((HIDDEN,), jnp.float32),
        }
        p["layers"].append(layer)
    return p


def pack_params(p):
    """One-time (outside the jit hot path) repack into the fused-kernel layout:
    fused+scaled QKV, stacked (N_LAYERS, ...) weights, 2-D (1, N) biases/LN params,
    lane-padded classifier weights."""
    scale = 1.0 / float(HEAD_DIM) ** 0.5
    L = p["layers"]
    return {
        "word_emb": p["word_emb"],
        "pos_emb": p["pos_emb"],
        "type_emb": p["type_emb"],
        "emb_ln_g": p["emb_ln_g"].reshape(1, HIDDEN),
        "emb_ln_b": p["emb_ln_b"].reshape(1, HIDDEN),
        # attention scale folded into the Q block of the fused QKV weight/bias
        "qkv_w": jnp.stack([jnp.concatenate([l["q_w"] * scale, l["k_w"], l["v_w"]],
                                            axis=1) for l in L]),              # (L, H, 3H)
        "qkv_b": jnp.stack([jnp.concatenate([l["q_b"] * scale, l["k_b"], l["v_b"]]
                                            ).reshape(1, 3 * HIDDEN) for l in L]),
        "o_w": jnp.stack([l["o_w"] for l in L]),                                # (L, H, H)
        "o_b": jnp.stack([l["o_b"].reshape(1, HIDDEN) for l in L]),
        "attn_ln_g": jnp.stack([l["attn_ln_g"].reshape(1, HIDDEN) for l in L]),
        "attn_ln_b": jnp.stack([l["attn_ln_b"].reshape(1, HIDDEN) for l in L]),
        "ffn_w1": jnp.stack([l["ffn_w1"] for l in L]),                          # (L, H, I)
        "ffn_b1": jnp.stack([l["ffn_b1"].reshape(1, INTERMEDIATE) for l in L]),
        "ffn_w2": jnp.stack([l["ffn_w2"] for l in L]),                          # (L, I, H)
        "ffn_b2": jnp.stack([l["ffn_b2"].reshape(1, HIDDEN) for l in L]),
        "ffn_ln_g": jnp.stack([l["ffn_ln_g"].reshape(1, HIDDEN) for l in L]),
        "ffn_ln_b": jnp.stack([l["ffn_ln_b"].reshape(1, HIDDEN) for l in L]),
        "cls_w": jnp.zeros((HIDDEN, CLS_PAD), jnp.float32).at[:, :NUM_CLASSES].set(p["cls_w"]),
        "cls_b": jnp.zeros((1, CLS_PAD), jnp.float32).at[:, :NUM_CLASSES].set(p["cls_b"]),
    }


# ----------------------------- forward pass ------------------------------------
def bert_classifier_forward(packed, input_ids, attention_mask):
    B, S = input_ids.shape

    # --- embedding gathers stay as JAX glue ---
    pos_ids = jnp.arange(S, dtype=jnp.int32)
    tok_type = jnp.zeros((B, S), dtype=jnp.int32)
    emb = (
        jnp.take(packed["word_emb"], input_ids, axis=0)
        + jnp.take(packed["pos_emb"], pos_ids, axis=0)[None, :, :]
        + jnp.take(packed["type_emb"], tok_type, axis=0)
    )                                                   # (B, S, H)
    emb2d = emb.reshape(B * S, HIDDEN)

    # additive attention-mask bias, pre-broadcast to (B, S, S) so the kernel adds it directly
    mask_bias = (1.0 - attention_mask.astype(jnp.float32)) * -10000.0
    bias3d = jnp.broadcast_to(mask_bias[:, None, :], (B, S, S))

    # TODO(synk): for non-toy batch sizes, add a grid over B with
    # dimension_semantics=("parallel",) so v7x's second TensorCore gets work.
    logits_pad = pl.pallas_call(
        _bert_fused_kernel,
        out_shape=jax.ShapeDtypeStruct((B, CLS_PAD), jnp.float32),
        in_specs=[_VMEM_SPEC] * 18,
        out_specs=_VMEM_SPEC,
    )(
        emb2d, bias3d,
        packed["emb_ln_g"], packed["emb_ln_b"],
        packed["qkv_w"], packed["qkv_b"], packed["o_w"], packed["o_b"],
        packed["attn_ln_g"], packed["attn_ln_b"],
        packed["ffn_w1"], packed["ffn_b1"], packed["ffn_w2"], packed["ffn_b2"],
        packed["ffn_ln_g"], packed["ffn_ln_b"],
        packed["cls_w"], packed["cls_b"],
    )
    return logits_pad[:, :NUM_CLASSES]


# ----------------------------- main ---------------------------------------------
if __name__ == "__main__":
    key = jax.random.PRNGKey(0)
    pkey, dkey = jax.random.split(key)

    params = init_params(pkey)
    packed = pack_params(params)       # packed once, outside the jitted hot path

    B, S = 2, 8
    input_ids = jax.random.randint(dkey, (B, S), 0, VOCAB, dtype=jnp.int32)
    attention_mask = jnp.ones((B, S), dtype=jnp.int32)

    fwd = jax.jit(bert_classifier_forward)
    logits = jax.block_until_ready(fwd(packed, input_ids, attention_mask))
    assert logits.shape == (B, NUM_CLASSES) and logits.dtype == jnp.float32
    print("KERNEL_OK")
</pallas_src>

<mosaic_0001>
module attributes {stable_mosaic.version = 11 : i64} {
  func.func @_bert_fused_kernel(%arg0: memref<16x32xf32, #tpu.memory_space<vmem>>, %arg1: memref<2x8x8xf32, #tpu.memory_space<vmem>>, %arg2: memref<1x32xf32, #tpu.memory_space<vmem>>, %arg3: memref<1x32xf32, #tpu.memory_space<vmem>>, %arg4: memref<2x32x96xf32, #tpu.memory_space<vmem>>, %arg5: memref<2x1x96xf32, #tpu.memory_space<vmem>>, %arg6: memref<2x32x32xf32, #tpu.memory_space<vmem>>, %arg7: memref<2x1x32xf32, #tpu.memory_space<vmem>>, %arg8: memref<2x1x32xf32, #tpu.memory_space<vmem>>, %arg9: memref<2x1x32xf32, #tpu.memory_space<vmem>>, %arg10: memref<2x32x64xf32, #tpu.memory_space<vmem>>, %arg11: memref<2x1x64xf32, #tpu.memory_space<vmem>>, %arg12: memref<2x64x32xf32, #tpu.memory_space<vmem>>, %arg13: memref<2x1x32xf32, #tpu.memory_space<vmem>>, %arg14: memref<2x1x32xf32, #tpu.memory_space<vmem>>, %arg15: memref<2x1x32xf32, #tpu.memory_space<vmem>>, %arg16: memref<32x128xf32, #tpu.memory_space<vmem>>, %arg17: memref<1x128xf32, #tpu.memory_space<vmem>>, %arg18: memref<2x128xf32, #tpu.memory_space<vmem>>) attributes {dimension_semantics = [], scalar_prefetch = 0 : i64, scratch_operands = 0 : i64, tpu.core_type = #tpu.core_type<tc>} {
    %c0 = arith.constant 0 : index
    %c0_0 = arith.constant 0 : index
    %0 = vector.load %arg0[%c0, %c0_0] : memref<16x32xf32, #tpu.memory_space<vmem>>, vector<16x32xf32>
    %c0_1 = arith.constant 0 : index
    %c0_2 = arith.constant 0 : index
    %1 = vector.load %arg2[%c0_1, %c0_2] : memref<1x32xf32, #tpu.memory_space<vmem>>, vector<1x32xf32>
    %c0_3 = arith.constant 0 : index
    %c0_4 = arith.constant 0 : index
    %2 = vector.load %arg3[%c0_3, %c0_4] : memref<1x32xf32, #tpu.memory_space<vmem>>, vector<1x32xf32>
    %cst = arith.constant dense<0.000000e+00> : vector<16xf32>
    %3 = vector.multi_reduction <add>, %0, %cst [1] : vector<16x32xf32> to vector<16xf32>
    %4 = vector.shape_cast %3 : vector<16xf32> to vector<16x1xf32>
    %cst_5 = arith.constant 3.200000e+01 : f32
    %5 = vector.broadcast %cst_5 : f32 to vector<16x1xf32>
    %6 = arith.divf %4, %5 : vector<16x1xf32>
    %7 = vector.broadcast %6 : vector<16x1xf32> to vector<16x32xf32>
    %8 = arith.subf %0, %7 : vector<16x32xf32>
    %9 = arith.mulf %8, %8 : vector<16x32xf32>
    %cst_6 = arith.constant dense<0.000000e+00> : vector<16xf32>
    %10 = vector.multi_reduction <add>, %9, %cst_6 [1] : vector<16x32xf32> to vector<16xf32>
    %11 = vector.shape_cast %10 : vector<16xf32> to vector<16x1xf32>
    %cst_7 = arith.constant 3.200000e+01 : f32
    %12 = vector.broadcast %cst_7 : f32 to vector<16x1xf32>
    %13 = arith.divf %11, %12 : vector<16x1xf32>
    %cst_8 = arith.constant 9.99999996E-13 : f32
    %14 = vector.broadcast %cst_8 : f32 to vector<16x1xf32>
    %15 = arith.addf %13, %14 : vector<16x1xf32>
    %16 = math.rsqrt %15 : vector<16x1xf32>
    %17 = vector.broadcast %16 : vector<16x1xf32> to vector<16x32xf32>
    %18 = arith.mulf %8, %17 : vector<16x32xf32>
    %19 = vector.broadcast %1 : vector<1x32xf32> to vector<16x32xf32>
    %20 = arith.mulf %18, %19 : vector<16x32xf32>
    %21 = vector.broadcast %2 : vector<1x32xf32> to vector<16x32xf32>
    %22 = arith.addf %20, %21 : vector<16x32xf32>
    %c0_9 = arith.constant 0 : index
    %c0_10 = arith.constant 0 : index
    %c0_11 = arith.constant 0 : index
    %23 = vector.load %arg1[%c0_9, %c0_10, %c0_11] : memref<2x8x8xf32, #tpu.memory_space<vmem>>, vector<2x8x8xf32>
    %c0_12 = arith.constant 0 : index
    %c0_13 = arith.constant 0 : index
    %c0_14 = arith.constant 0 : index
    %24 = vector.load %arg4[%c0_12, %c0_13, %c0_14] : memref<2x32x96xf32, #tpu.memory_space<vmem>>, vector<1x32x96xf32>
    %25 = vector.shape_cast %24 : vector<1x32x96xf32> to vector<32x96xf32>
    %cst_15 = arith.constant dense<0.000000e+00> : vector<16x96xf32>
    %26 = tpu.matmul %22, %25, %cst_15 {dimension_numbers = #tpu.dot_dimension_numbers<[1], [0], [0], [1], [0, 0, 1, 1], [], []>} : vector<16x32xf32>, vector<32x96xf32>, vector<16x96xf32> -> vector<16x96xf32>
    %c0_16 = arith.constant 0 : index
    %c0_17 = arith.constant 0 : index
    %c0_18 = arith.constant 0 : index
    %27 = vector.load %arg5[%c0_16, %c0_17, %c0_18] : memref<2x1x96xf32, #tpu.memory_space<vmem>>, vector<1x1x96xf32>
    %28 = vector.shape_cast %27 : vector<1x1x96xf32> to vector<1x96xf32>
    %29 = vector.broadcast %28 : vector<1x96xf32> to vector<16x96xf32>
    %30 = arith.addf %26, %29 : vector<16x96xf32>
    %c0_19 = arith.constant 0 : index
    %c0_20 = arith.constant 0 : index
    %c0_21 = arith.constant 0 : index
    %31 = vector.load %arg6[%c0_19, %c0_20, %c0_21] : memref<2x32x32xf32, #tpu.memory_space<vmem>>, vector<1x32x32xf32>
    %32 = vector.shape_cast %31 : vector<1x32x32xf32> to vector<32x32xf32>
    %cst_22 = arith.constant 0.000000e+00 : f32
    %33 = vector.broadcast %cst_22 : f32 to vector<16x32xf32>
    %34 = vector.extract_strided_slice %30 {offsets = [0, 0], sizes = [16, 8], strides = [1, 1]} : vector<16x96xf32> to vector<16x8xf32>
    %35 = vector.shape_cast %34 : vector<16x8xf32> to vector<2x8x8xf32>
    %36 = vector.extract_strided_slice %30 {offsets = [0, 32], sizes = [16, 8], strides = [1, 1]} : vector<16x96xf32> to vector<16x8xf32>
    %37 = vector.shape_cast %36 : vector<16x8xf32> to vector<2x8x8xf32>
    %38 = vector.extract_strided_slice %30 {offsets = [0, 64], sizes = [16, 8], strides = [1, 1]} : vector<16x96xf32> to vector<16x8xf32>
    %39 = vector.shape_cast %38 : vector<16x8xf32> to vector<2x8x8xf32>
    "tpu.trace_start"() <{level = 10 : i32, message = "bqd,bkd->bqk"}> : () -> ()
    %cst_23 = arith.constant dense<0.000000e+00> : vector<2x8x8xf32>
    %40 = tpu.matmul %35, %37, %cst_23 {dimension_numbers = #tpu.dot_dimension_numbers<[2], [2], [1], [1], [0, 0, 0, 1, 1, 1], [0], [0]>} : vector<2x8x8xf32>, vector<2x8x8xf32>, vector<2x8x8xf32> -> vector<2x8x8xf32>
    "tpu.trace_stop"() : () -> ()
    %41 = arith.addf %40, %23 : vector<2x8x8xf32>
    %cst_24 = arith.constant dense<0xFF800000> : vector<2x8xf32>
    %42 = vector.multi_reduction <maximumf>, %41, %cst_24 [2] : vector<2x8x8xf32> to vector<2x8xf32>
    %43 = vector.shape_cast %42 : vector<2x8xf32> to vector<2x8x1xf32>
    %44 = vector.broadcast %43 : vector<2x8x1xf32> to vector<2x8x8xf32>
    %45 = arith.subf %41, %44 : vector<2x8x8xf32>
    %46 = math.exp %45 : vector<2x8x8xf32>
    %cst_25 = arith.constant dense<0.000000e+00> : vector<2x8xf32>
    %47 = vector.multi_reduction <add>, %46, %cst_25 [2] : vector<2x8x8xf32> to vector<2x8xf32>
    %48 = vector.shape_cast %47 : vector<2x8xf32> to vector<2x8x1xf32>
    %49 = tpu.reciprocal %48 {approx = true} : vector<2x8x1xf32> -> vector<2x8x1xf32>
    %50 = vector.broadcast %49 : vector<2x8x1xf32> to vector<2x8x8xf32>
    %51 = arith.mulf %46, %50 : vector<2x8x8xf32>
    "tpu.trace_start"() <{level = 10 : i32, message = "bqk,bkd->bqd"}> : () -> ()
    %cst_26 = arith.constant dense<0.000000e+00> : vector<2x8x8xf32>
    %52 = tpu.matmul %51, %39, %cst_26 {dimension_numbers = #tpu.dot_dimension_numbers<[2], [1], [1], [2], [0, 0, 0, 1, 1, 2], [0], [0]>} : vector<2x8x8xf32>, vector<2x8x8xf32>, vector<2x8x8xf32> -> vector<2x8x8xf32>
    "tpu.trace_stop"() : () -> ()
    %53 = vector.shape_cast %52 : vector<2x8x8xf32> to vector<16x8xf32>
    %54 = vector.extract_strided_slice %32 {offsets = [0, 0], sizes = [8, 32], strides = [1, 1]} : vector<32x32xf32> to vector<8x32xf32>
    %cst_27 = arith.constant dense<0.000000e+00> : vector<16x32xf32>
    %55 = tpu.matmul %53, %54, %cst_27 {dimension_numbers = #tpu.dot_dimension_numbers<[1], [0], [0], [1], [0, 0, 1, 1], [], []>} : vector<16x8xf32>, vector<8x32xf32>, vector<16x32xf32> -> vector<16x32xf32>
    %56 = arith.addf %33, %55 : vector<16x32xf32>
    %57 = vector.extract_strided_slice %30 {offsets = [0, 8], sizes = [16, 8], strides = [1, 1]} : vector<16x96xf32> to vector<16x8xf32>
    %58 = vector.shape_cast %57 : vector<16x8xf32> to vector<2x8x8xf32>
    %59 = vector.extract_strided_slice %30 {offsets = [0, 40], sizes = [16, 8], strides = [1, 1]} : vector<16x96xf32> to vector<16x8xf32>
    %60 = vector.shape_cast %59 : vector<16x8xf32> to vector<2x8x8xf32>
    %61 = vector.extract_strided_slice %30 {offsets = [0, 72], sizes = [16, 8], strides = [1, 1]} : vector<16x96xf32> to vector<16x8xf32>
    %62 = vector.shape_cast %61 : vector<16x8xf32> to vector<2x8x8xf32>
    "tpu.trace_start"() <{level = 10 : i32, message = "bqd,bkd->bqk"}> : () -> ()
    %cst_28 = arith.constant dense<0.000000e+00> : vector<2x8x8xf32>
    %63 = tpu.matmul %58, %60, %cst_28 {dimension_numbers = #tpu.dot_dimension_numbers<[2], [2], [1], [1], [0, 0, 0, 1, 1, 1], [0], [0]>} : vector<2x8x8xf32>, vector<2x8x8xf32>, vector<2x8x8xf32> -> vector<2x8x8xf32>
    "tpu.trace_stop"() : () -> ()
    %64 = arith.addf %63, %23 : vector<2x8x8xf32>
    %cst_29 = arith.constant dense<0xFF800000> : vector<2x8xf32>
    %65 = vector.multi_reduction <maximumf>, %64, %cst_29 [2] : vector<2x8x8xf32> to vector<2x8xf32>
    %66 = vector.shape_cast %65 : vector<2x8xf32> to vector<2x8x1xf32>
    %67 = vector.broadcast %66 : vector<2x8x1xf32> to vector<2x8x8xf32>
    %68 = arith.subf %64, %67 : vector<2x8x8xf32>
    %69 = math.exp %68 : vector<2x8x8xf32>
    %cst_30 = arith.constant dense<0.000000e+00> : vector<2x8xf32>
    %70 = vector.multi_reduction <add>, %69, %cst_30 [2] : vector<2x8x8xf32> to vector<2x8xf32>
    %71 = vector.shape_cast %70 : vector<2x8xf32> to vector<2x8x1xf32>
    %72 = tpu.reciprocal %71 {approx = true} : vector<2x8x1xf32> -> vector<2x8x1xf32>
    %73 = vector.broadcast %72 : vector<2x8x1xf32> to vector<2x8x8xf32>
    %74 = arith.mulf %69, %73 : vector<2x8x8xf32>
    "tpu.trace_start"() <{level = 10 : i32, message = "bqk,bkd->bqd"}> : () -> ()
    %cst_31 = arith.constant dense<0.000000e+00> : vector<2x8x8xf32>
    %75 = tpu.matmul %74, %62, %cst_31 {dimension_numbers = #tpu.dot_dimension_numbers<[2], [1], [1], [2], [0, 0, 0, 1, 1, 2], [0], [0]>} : vector<2x8x8xf32>, vector<2x8x8xf32>, vector<2x8x8xf32> -> vector<2x8x8xf32>
    "tpu.trace_stop"() : () -> ()
    %76 = vector.shape_cast %75 : vector<2x8x8xf32> to vector<16x8xf32>
    %77 = vector.extract_strided_slice %32 {offsets = [8, 0], sizes = [8, 32], strides = [1, 1]} : vector<32x32xf32> to vector<8x32xf32>
    %cst_32 = arith.constant dense<0.000000e+00> : vector<16x32xf32>
    %78 = tpu.matmul %76, %77, %cst_32 {dimension_numbers = #tpu.dot_dimension_numbers<[1], [0], [0], [1], [0, 0, 1, 1], [], []>} : vector<16x8xf32>, vector<8x32xf32>, vector<16x32xf32> -> vector<16x32xf32>
    %79 = arith.addf %56, %78 : vector<16x32xf32>
    %80 = vector.extract_strided_slice %30 {offsets = [0, 16], sizes = [16, 8], strides = [1, 1]} : vector<16x96xf32> to vector<16x8xf32>
    %81 = vector.shape_cast %80 : vector<16x8xf32> to vector<2x8x8xf32>
    %82 = vector.extract_strided_slice %30 {offsets = [0, 48], sizes = [16, 8], strides = [1, 1]} : vector<16x96xf32> to vector<16x8xf32>
    %83 = vector.shape_cast %82 : vector<16x8xf32> to vector<2x8x8xf32>
    %84 = vector.extract_strided_slice %30 {offsets = [0, 80], sizes = [16, 8], strides = [1, 1]} : vector<16x96xf32> to vector<16x8xf32>
    %85 = vector.shape_cast %84 : vector<16x8xf32> to vector<2x8x8xf32>
    "tpu.trace_start"() <{level = 10 : i32, message = "bqd,bkd->bqk"}> : () -> ()
    %cst_33 = arith.constant dense<0.000000e+00> : vector<2x8x8xf32>
    %86 = tpu.matmul %81, %83, %cst_33 {dimension_numbers = #tpu.dot_dimension_numbers<[2], [2], [1], [1], [0, 0, 0, 1, 1, 1], [0], [0]>} : vector<2x8x8xf32>, vector<2x8x8xf32>, vector<2x8x8xf32> -> vector<2x8x8xf32>
    "tpu.trace_stop"() : () -> ()
    %87 = arith.addf %86, %23 : vector<2x8x8xf32>
    %cst_34 = arith.constant dense<0xFF800000> : vector<2x8xf32>
    %88 = vector.multi_reduction <maximumf>, %87, %cst_34 [2] : vector<2x8x8xf32> to vector<2x8xf32>
    %89 = vector.shape_cast %88 : vector<2x8xf32> to vector<2x8x1xf32>
    %90 = vector.broadcast %89 : vector<2x8x1xf32> to vector<2x8x8xf32>
    %91 = arith.subf %87, %90 : vector<2x8x8xf32>
    %92 = math.exp %91 : vector<2x8x8xf32>
    %cst_35 = arith.constant dense<0.000000e+00> : vector<2x8xf32>
    %93 = vector.multi_reduction <add>, %92, %cst_35 [2] : vector<2x8x8xf32> to vector<2x8xf32>
    %94 = vector.shape_cast %93 : vector<2x8xf32> to vector<2x8x1xf32>
    %95 = tpu.reciprocal %94 {approx = true} : vector<2x8x1xf32> -> vector<2x8x1xf32>
    %96 = vector.broadcast %95 : vector<2x8x1xf32> to vector<2x8x8xf32>
    %97 = arith.mulf %92, %96 : vector<2x8x8xf32>
    "tpu.trace_start"() <{level = 10 : i32, message = "bqk,bkd->bqd"}> : () -> ()
    %cst_36 = arith.constant dense<0.000000e+00> : vector<2x8x8xf32>
    %98 = tpu.matmul %97, %85, %cst_36 {dimension_numbers = #tpu.dot_dimension_numbers<[2], [1], [1], [2], [0, 0, 0, 1, 1, 2], [0], [0]>} : vector<2x8x8xf32>, vector<2x8x8xf32>, vector<2x8x8xf32> -> vector<2x8x8xf32>
    "tpu.trace_stop"() : () -> ()
    %99 = vector.shape_cast %98 : vector<2x8x8xf32> to vector<16x8xf32>
    %100 = vector.extract_strided_slice %32 {offsets = [16, 0], sizes = [8, 32], strides = [1, 1]} : vector<32x32xf32> to vector<8x32xf32>
    %cst_37 = arith.constant dense<0.000000e+00> : vector<16x32xf32>
    %101 = tpu.matmul %99, %100, %cst_37 {dimension_numbers = #tpu.dot_dimension_numbers<[1], [0], [0], [1], [0, 0, 1, 1], [], []>} : vector<16x8xf32>, vector<8x32xf32>, vector<16x32xf32> -> vector<16x32xf32>
    %102 = arith.addf %79, %101 : vector<16x32xf32>
    %103 = vector.extract_strided_slice %30 {offsets = [0, 24], sizes = [16, 8], strides = [1, 1]} : vector<16x96xf32> to vector<16x8xf32>
    %104 = vector.shape_cast %103 : vector<16x8xf32> to vector<2x8x8xf32>
    %105 = vector.extract_strided_slice %30 {offsets = [0, 56], sizes = [16, 8], strides = [1, 1]} : vector<16x96xf32> to vector<16x8xf32>
    %106 = vector.shape_cast %105 : vector<16x8xf32> to vector<2x8x8xf32>
    %107 = vector.extract_strided_slice %30 {offsets = [0, 88], sizes = [16, 8], strides = [1, 1]} : vector<16x96xf32> to vector<16x8xf32>
    %108 = vector.shape_cast %107 : vector<16x8xf32> to vector<2x8x8xf32>
    "tpu.trace_start"() <{level = 10 : i32, message = "bqd,bkd->bqk"}> : () -> ()
    %cst_38 = arith.constant dense<0.000000e+00> : vector<2x8x8xf32>
    %109 = tpu.matmul %104, %106, %cst_38 {dimension_numbers = #tpu.dot_dimension_numbers<[2], [2], [1], [1], [0, 0, 0, 1, 1, 1], [0], [0]>} : vector<2x8x8xf32>, vector<2x8x8xf32>, vector<2x8x8xf32> -> vector<2x8x8xf32>
    "tpu.trace_stop"() : () -> ()
    %110 = arith.addf %109, %23 : vector<2x8x8xf32>
    %cst_39 = arith.constant dense<0xFF800000> : vector<2x8xf32>
    %111 = vector.multi_reduction <maximumf>, %110, %cst_39 [2] : vector<2x8x8xf32> to vector<2x8xf32>
    %112 = vector.shape_cast %111 : vector<2x8xf32> to vector<2x8x1xf32>
    %113 = vector.broadcast %112 : vector<2x8x1xf32> to vector<2x8x8xf32>
    %114 = arith.subf %110, %113 : vector<2x8x8xf32>
    %115 = math.exp %114 : vector<2x8x8xf32>
    %cst_40 = arith.constant dense<0.000000e+00> : vector<2x8xf32>
    %116 = vector.multi_reduction <add>, %115, %cst_40 [2] : vector<2x8x8xf32> to vector<2x8xf32>
    %117 = vector.shape_cast %116 : vector<2x8xf32> to vector<2x8x1xf32>
    %118 = tpu.reciprocal %117 {approx = true} : vector<2x8x1xf32> -> vector<2x8x1xf32>
    %119 = vector.broadcast %118 : vector<2x8x1xf32> to vector<2x8x8xf32>
    %120 = arith.mulf %115, %119 : vector<2x8x8xf32>
    "tpu.trace_start"() <{level = 10 : i32, message = "bqk,bkd->bqd"}> : () -> ()
    %cst_41 = arith.constant dense<0.000000e+00> : vector<2x8x8xf32>
    %121 = tpu.matmul %120, %108, %cst_41 {dimension_numbers = #tpu.dot_dimension_numbers<[2], [1], [1], [2], [0, 0, 0, 1, 1, 2], [0], [0]>} : vector<2x8x8xf32>, vector<2x8x8xf32>, vector<2x8x8xf32> -> vector<2x8x8xf32>
    "tpu.trace_stop"() : () -> ()
    %122 = vector.shape_cast %121 : vector<2x8x8xf32> to vector<16x8xf32>
    %123 = vector.extract_strided_slice %32 {offsets = [24, 0], sizes = [8, 32], strides = [1, 1]} : vector<32x32xf32> to vector<8x32xf32>
    %cst_42 = arith.constant dense<0.000000e+00> : vector<16x32xf32>
    %124 = tpu.matmul %122, %123, %cst_42 {dimension_numbers = #tpu.dot_dimension_numbers<[1], [0], [0], [1], [0, 0, 1, 1], [], []>} : vector<16x8xf32>, vector<8x32xf32>, vector<16x32xf32> -> vector<16x32xf32>
    %125 = arith.addf %102, %124 : vector<16x32xf32>
    %126 = arith.addf %22, %125 : vector<16x32xf32>
    %c0_43 = arith.constant 0 : index
    %c0_44 = arith.constant 0 : index
    %c0_45 = arith.constant 0 : index
    %127 = vector.load %arg7[%c0_43, %c0_44, %c0_45] : memref<2x1x32xf32, #tpu.memory_space<vmem>>, vector<1x1x32xf32>
    %128 = vector.shape_cast %127 : vector<1x1x32xf32> to vector<1x32xf32>
    %129 = vector.broadcast %128 : vector<1x32xf32> to vector<16x32xf32>
    %130 = arith.addf %126, %129 : vector<16x32xf32>
    %c0_46 = arith.constant 0 : index
    %c0_47 = arith.constant 0 : index
    %c0_48 = arith.constant 0 : index
    %131 = vector.load %arg8[%c0_46, %c0_47, %c0_48] : memref<2x1x32xf32, #tpu.memory_space<vmem>>, vector<1x1x32xf32>
    %132 = vector.shape_cast %131 : vector<1x1x32xf32> to vector<1x32xf32>
    %c0_49 = arith.constant 0 : index
    %c0_50 = arith.constant 0 : index
    %c0_51 = arith.constant 0 : index
    %133 = vector.load %arg9[%c0_49, %c0_50, %c0_51] : memref<2x1x32xf32, #tpu.memory_space<vmem>>, vector<1x1x32xf32>
    %134 = vector.shape_cast %133 : vector<1x1x32xf32> to vector<1x32xf32>
    %cst_52 = arith.constant dense<0.000000e+00> : vector<16xf32>
    %135 = vector.multi_reduction <add>, %130, %cst_52 [1] : vector<16x32xf32> to vector<16xf32>
    %136 = vector.shape_cast %135 : vector<16xf32> to vector<16x1xf32>
    %cst_53 = arith.constant 3.200000e+01 : f32
    %137 = vector.broadcast %cst_53 : f32 to vector<16x1xf32>
    %138 = arith.divf %136, %137 : vector<16x1xf32>
    %139 = vector.broadcast %138 : vector<16x1xf32> to vector<16x32xf32>
    %140 = arith.subf %130, %139 : vector<16x32xf32>
    %141 = arith.mulf %140, %140 : vector<16x32xf32>
    %cst_54 = arith.constant dense<0.000000e+00> : vector<16xf32>
    %142 = vector.multi_reduction <add>, %141, %cst_54 [1] : vector<16x32xf32> to vector<16xf32>
    %143 = vector.shape_cast %142 : vector<16xf32> to vector<16x1xf32>
    %cst_55 = arith.constant 3.200000e+01 : f32
    %144 = vector.broadcast %cst_55 : f32 to vector<16x1xf32>
    %145 = arith.divf %143, %144 : vector<16x1xf32>
    %cst_56 = arith.constant 9.99999996E-13 : f32
    %146 = vector.broadcast %cst_56 : f32 to vector<16x1xf32>
    %147 = arith.addf %145, %146 : vector<16x1xf32>
    %148 = math.rsqrt %147 : vector<16x1xf32>
    %149 = vector.broadcast %148 : vector<16x1xf32> to vector<16x32xf32>
    %150 = arith.mulf %140, %149 : vector<16x32xf32>
    %151 = vector.broadcast %132 : vector<1x32xf32> to vector<16x32xf32>
    %152 = arith.mulf %150, %151 : vector<16x32xf32>
    %153 = vector.broadcast %134 : vector<1x32xf32> to vector<16x32xf32>
    %154 = arith.addf %152, %153 : vector<16x32xf32>
    %c0_57 = arith.constant 0 : index
    %c0_58 = arith.constant 0 : index
    %c0_59 = arith.constant 0 : index
    %155 = vector.load %arg10[%c0_57, %c0_58, %c0_59] : memref<2x32x64xf32, #tpu.memory_space<vmem>>, vector<1x32x64xf32>
    %156 = vector.shape_cast %155 : vector<1x32x64xf32> to vector<32x64xf32>
    %cst_60 = arith.constant dense<0.000000e+00> : vector<16x64xf32>
    %157 = tpu.matmul %154, %156, %cst_60 {dimension_numbers = #tpu.dot_dimension_numbers<[1], [0], [0], [1], [0, 0, 1, 1], [], []>} : vector<16x32xf32>, vector<32x64xf32>, vector<16x64xf32> -> vector<16x64xf32>
    %c0_61 = arith.constant 0 : index
    %c0_62 = arith.constant 0 : index
    %c0_63 = arith.constant 0 : index
    %158 = vector.load %arg11[%c0_61, %c0_62, %c0_63] : memref<2x1x64xf32, #tpu.memory_space<vmem>>, vector<1x1x64xf32>
    %159 = vector.shape_cast %158 : vector<1x1x64xf32> to vector<1x64xf32>
    %160 = vector.broadcast %159 : vector<1x64xf32> to vector<16x64xf32>
    %161 = arith.addf %157, %160 : vector<16x64xf32>
    %cst_64 = arith.constant 5.000000e-01 : f32
    %162 = vector.broadcast %cst_64 : f32 to vector<16x64xf32>
    %163 = arith.mulf %162, %161 : vector<16x64xf32>
    %cst_65 = arith.constant 4.471500e-02 : f32
    %164 = vector.broadcast %cst_65 : f32 to vector<16x64xf32>
    %165 = arith.mulf %164, %161 : vector<16x64xf32>
    %166 = arith.mulf %165, %161 : vector<16x64xf32>
    %167 = arith.mulf %166, %161 : vector<16x64xf32>
    %168 = arith.addf %161, %167 : vector<16x64xf32>
    %cst_66 = arith.constant 0.797884583 : f32
    %169 = vector.broadcast %cst_66 : f32 to vector<16x64xf32>
    %170 = arith.mulf %169, %168 : vector<16x64xf32>
    %171 = math.tanh %170 : vector<16x64xf32>
    %cst_67 = arith.constant 1.000000e+00 : f32
    %172 = vector.broadcast %cst_67 : f32 to vector<16x64xf32>
    %173 = arith.addf %172, %171 : vector<16x64xf32>
    %174 = arith.mulf %163, %173 : vector<16x64xf32>
    %c0_68 = arith.constant 0 : index
    %c0_69 = arith.constant 0 : index
    %c0_70 = arith.constant 0 : index
    %175 = vector.load %arg12[%c0_68, %c0_69, %c0_70] : memref<2x64x32xf32, #tpu.memory_space<vmem>>, vector<1x64x32xf32>
    %176 = vector.shape_cast %175 : vector<1x64x32xf32> to vector<64x32xf32>
    %cst_71 = arith.constant dense<0.000000e+00> : vector<16x32xf32>
    %177 = tpu.matmul %174, %176, %cst_71 {dimension_numbers = #tpu.dot_dimension_numbers<[1], [0], [0], [1], [0, 0, 1, 1], [], []>} : vector<16x64xf32>, vector<64x32xf32>, vector<16x32xf32> -> vector<16x32xf32>
    %c0_72 = arith.constant 0 : index
    %c0_73 = arith.constant 0 : index
    %c0_74 = arith.constant 0 : index
    %178 = vector.load %arg13[%c0_72, %c0_73, %c0_74] : memref<2x1x32xf32, #tpu.memory_space<vmem>>, vector<1x1x32xf32>
    %179 = vector.shape_cast %178 : vector<1x1x32xf32> to vector<1x32xf32>
    %180 = vector.broadcast %179 : vector<1x32xf32> to vector<16x32xf32>
    %181 = arith.addf %177, %180 : vector<16x32xf32>
    %182 = arith.addf %154, %181 : vector<16x32xf32>
    %c0_75 = arith.constant 0 : index
    %c0_76 = arith.constant 0 : index
    %c0_77 = arith.constant 0 : index
    %183 = vector.load %arg14[%c0_75, %c0_76, %c0_77] : memref<2x1x32xf32, #tpu.memory_space<vmem>>, vector<1x1x32xf32>
    %184 = vector.shape_cast %183 : vector<1x1x32xf32> to vector<1x32xf32>
    %c0_78 = arith.constant 0 : index
    %c0_79 = arith.constant 0 : index
    %c0_80 = arith.constant 0 : index
    %185 = vector.load %arg15[%c0_78, %c0_79, %c0_80] : memref<2x1x32xf32, #tpu.memory_space<vmem>>, vector<1x1x32xf32>
    %186 = vector.shape_cast %185 : vector<1x1x32xf32> to vector<1x32xf32>
    %cst_81 = arith.constant dense<0.000000e+00> : vector<16xf32>
    %187 = vector.multi_reduction <add>, %182, %cst_81 [1] : vector<16x32xf32> to vector<16xf32>
    %188 = vector.shape_cast %187 : vector<16xf32> to vector<16x1xf32>
    %cst_82 = arith.constant 3.200000e+01 : f32
    %189 = vector.broadcast %cst_82 : f32 to vector<16x1xf32>
    %190 = arith.divf %188, %189 : vector<16x1xf32>
    %191 = vector.broadcast %190 : vector<16x1xf32> to vector<16x32xf32>
    %192 = arith.subf %182, %191 : vector<16x32xf32>
    %193 = arith.mulf %192, %192 : vector<16x32xf32>
    %cst_83 = arith.constant dense<0.000000e+00> : vector<16xf32>
    %194 = vector.multi_reduction <add>, %193, %cst_83 [1] : vector<16x32xf32> to vector<16xf32>
    %195 = vector.shape_cast %194 : vector<16xf32> to vector<16x1xf32>
    %cst_84 = arith.constant 3.200000e+01 : f32
    %196 = vector.broadcast %cst_84 : f32 to vector<16x1xf32>
    %197 = arith.divf %195, %196 : vector<16x1xf32>
    %cst_85 = arith.constant 9.99999996E-13 : f32
    %198 = vector.broadcast %cst_85 : f32 to vector<16x1xf32>
    %199 = arith.addf %197, %198 : vector<16x1xf32>
    %200 = math.rsqrt %199 : vector<16x1xf32>
    %201 = vector.broadcast %200 : vector<16x1xf32> to vector<16x32xf32>
    %202 = arith.mulf %192, %201 : vector<16x32xf32>
    %203 = vector.broadcast %184 : vector<1x32xf32> to vector<16x32xf32>
    %204 = arith.mulf %202, %203 : vector<16x32xf32>
    %205 = vector.broadcast %186 : vector<1x32xf32> to vector<16x32xf32>
    %206 = arith.addf %204, %205 : vector<16x32xf32>
    %c1 = arith.constant 1 : index
    %c0_86 = arith.constant 0 : index
    %c0_87 = arith.constant 0 : index
    %207 = vector.load %arg4[%c1, %c0_86, %c0_87] : memref<2x32x96xf32, #tpu.memory_space<vmem>>, vector<1x32x96xf32>
    %208 = vector.shape_cast %207 : vector<1x32x96xf32> to vector<32x96xf32>
    %cst_88 = arith.constant dense<0.000000e+00> : vector<16x96xf32>
    %209 = tpu.matmul %206, %208, %cst_88 {dimension_numbers = #tpu.dot_dimension_numbers<[1], [0], [0], [1], [0, 0, 1, 1], [], []>} : vector<16x32xf32>, vector<32x96xf32>, vector<16x96xf32> -> vector<16x96xf32>
    %c1_89 = arith.constant 1 : index
    %c0_90 = arith.constant 0 : index
    %c0_91 = arith.constant 0 : index
    %210 = vector.load %arg5[%c1_89, %c0_90, %c0_91] : memref<2x1x96xf32, #tpu.memory_space<vmem>>, vector<1x1x96xf32>
    %211 = vector.shape_cast %210 : vector<1x1x96xf32> to vector<1x96xf32>
    %212 = vector.broadcast %211 : vector<1x96xf32> to vector<16x96xf32>
    %213 = arith.addf %209, %212 : vector<16x96xf32>
    %c1_92 = arith.constant 1 : index
    %c0_93 = arith.constant 0 : index
    %c0_94 = arith.constant 0 : index
    %214 = vector.load %arg6[%c1_92, %c0_93, %c0_94] : memref<2x32x32xf32, #tpu.memory_space<vmem>>, vector<1x32x32xf32>
    %215 = vector.shape_cast %214 : vector<1x32x32xf32> to vector<32x32xf32>
    %cst_95 = arith.constant 0.000000e+00 : f32
    %216 = vector.broadcast %cst_95 : f32 to vector<16x32xf32>
    %217 = vector.extract_strided_slice %213 {offsets = [0, 0], sizes = [16, 8], strides = [1, 1]} : vector<16x96xf32> to vector<16x8xf32>
    %218 = vector.shape_cast %217 : vector<16x8xf32> to vector<2x8x8xf32>
    %219 = vector.extract_strided_slice %213 {offsets = [0, 32], sizes = [16, 8], strides = [1, 1]} : vector<16x96xf32> to vector<16x8xf32>
    %220 = vector.shape_cast %219 : vector<16x8xf32> to vector<2x8x8xf32>
    %221 = vector.extract_strided_slice %213 {offsets = [0, 64], sizes = [16, 8], strides = [1, 1]} : vector<16x96xf32> to vector<16x8xf32>
    %222 = vector.shape_cast %221 : vector<16x8xf32> to vector<2x8x8xf32>
    "tpu.trace_start"() <{level = 10 : i32, message = "bqd,bkd->bqk"}> : () -> ()
    %cst_96 = arith.constant dense<0.000000e+00> : vector<2x8x8xf32>
    %223 = tpu.matmul %218, %220, %cst_96 {dimension_numbers = #tpu.dot_dimension_numbers<[2], [2], [1], [1], [0, 0, 0, 1, 1, 1], [0], [0]>} : vector<2x8x8xf32>, vector<2x8x8xf32>, vector<2x8x8xf32> -> vector<2x8x8xf32>
    "tpu.trace_stop"() : () -> ()
    %224 = arith.addf %223, %23 : vector<2x8x8xf32>
    %cst_97 = arith.constant dense<0xFF800000> : vector<2x8xf32>
    %225 = vector.multi_reduction <maximumf>, %224, %cst_97 [2] : vector<2x8x8xf32> to vector<2x8xf32>
    %226 = vector.shape_cast %225 : vector<2x8xf32> to vector<2x8x1xf32>
    %227 = vector.broadcast %226 : vector<2x8x1xf32> to vector<2x8x8xf32>
    %228 = arith.subf %224, %227 : vector<2x8x8xf32>
    %229 = math.exp %228 : vector<2x8x8xf32>
    %cst_98 = arith.constant dense<0.000000e+00> : vector<2x8xf32>
    %230 = vector.multi_reduction <add>, %229, %cst_98 [2] : vector<2x8x8xf32> to vector<2x8xf32>
    %231 = vector.shape_cast %230 : vector<2x8xf32> to vector<2x8x1xf32>
    %232 = tpu.reciprocal %231 {approx = true} : vector<2x8x1xf32> -> vector<2x8x1xf32>
    %233 = vector.broadcast %232 : vector<2x8x1xf32> to vector<2x8x8xf32>
    %234 = arith.mulf %229, %233 : vector<2x8x8xf32>
    "tpu.trace_start"() <{level = 10 : i32, message = "bqk,bkd->bqd"}> : () -> ()
    %cst_99 = arith.constant dense<0.000000e+00> : vector<2x8x8xf32>
    %235 = tpu.matmul %234, %222, %cst_99 {dimension_numbers = #tpu.dot_dimension_numbers<[2], [1], [1], [2], [0, 0, 0, 1, 1, 2], [0], [0]>} : vector<2x8x8xf32>, vector<2x8x8xf32>, vector<2x8x8xf32> -> vector<2x8x8xf32>
    "tpu.trace_stop"() : () -> ()
    %236 = vector.shape_cast %235 : vector<2x8x8xf32> to vector<16x8xf32>
    %237 = vector.extract_strided_slice %215 {offsets = [0, 0], sizes = [8, 32], strides = [1, 1]} : vector<32x32xf32> to vector<8x32xf32>
    %cst_100 = arith.constant dense<0.000000e+00> : vector<16x32xf32>
    %238 = tpu.matmul %236, %237, %cst_100 {dimension_numbers = #tpu.dot_dimension_numbers<[1], [0], [0], [1], [0, 0, 1, 1], [], []>} : vector<16x8xf32>, vector<8x32xf32>, vector<16x32xf32> -> vector<16x32xf32>
    %239 = arith.addf %216, %238 : vector<16x32xf32>
    %240 = vector.extract_strided_slice %213 {offsets = [0, 8], sizes = [16, 8], strides = [1, 1]} : vector<16x96xf32> to vector<16x8xf32>
    %241 = vector.shape_cast %240 : vector<16x8xf32> to vector<2x8x8xf32>
    %242 = vector.extract_strided_slice %213 {offsets = [0, 40], sizes = [16, 8], strides = [1, 1]} : vector<16x96xf32> to vector<16x8xf32>
    %243 = vector.shape_cast %242 : vector<16x8xf32> to vector<2x8x8xf32>
    %244 = vector.extract_strided_slice %213 {offsets = [0, 72], sizes = [16, 8], strides = [1, 1]} : vector<16x96xf32> to vector<16x8xf32>
    %245 = vector.shape_cast %244 : vector<16x8xf32> to vector<2x8x8xf32>
    "tpu.trace_start"() <{level = 10 : i32, message = "bqd,bkd->bqk"}> : () -> ()
    %cst_101 = arith.constant dense<0.000000e+00> : vector<2x8x8xf32>
    %246 = tpu.matmul %241, %243, %cst_101 {dimension_numbers = #tpu.dot_dimension_numbers<[2], [2], [1], [1], [0, 0, 0, 1, 1, 1], [0], [0]>} : vector<2x8x8xf32>, vector<2x8x8xf32>, vector<2x8x8xf32> -> vector<2x8x8xf32>
    "tpu.trace_stop"() : () -> ()
    %247 = arith.addf %246, %23 : vector<2x8x8xf32>
    %cst_102 = arith.constant dense<0xFF800000> : vector<2x8xf32>
    %248 = vector.multi_reduction <maximumf>, %247, %cst_102 [2] : vector<2x8x8xf32> to vector<2x8xf32>
    %249 = vector.shape_cast %248 : vector<2x8xf32> to vector<2x8x1xf32>
    %250 = vector.broadcast %249 : vector<2x8x1xf32> to vector<2x8x8xf32>
    %251 = arith.subf %247, %250 : vector<2x8x8xf32>
    %252 = math.exp %251 : vector<2x8x8xf32>
    %cst_103 = arith.constant dense<0.000000e+00> : vector<2x8xf32>
    %253 = vector.multi_reduction <add>, %252, %cst_103 [2] : vector<2x8x8xf32> to vector<2x8xf32>
    %254 = vector.shape_cast %253 : vector<2x8xf32> to vector<2x8x1xf32>
    %255 = tpu.reciprocal %254 {approx = true} : vector<2x8x1xf32> -> vector<2x8x1xf32>
    %256 = vector.broadcast %255 : vector<2x8x1xf32> to vector<2x8x8xf32>
    %257 = arith.mulf %252, %256 : vector<2x8x8xf32>
    "tpu.trace_start"() <{level = 10 : i32, message = "bqk,bkd->bqd"}> : () -> ()
    %cst_104 = arith.constant dense<0.000000e+00> : vector<2x8x8xf32>
    %258 = tpu.matmul %257, %245, %cst_104 {dimension_numbers = #tpu.dot_dimension_numbers<[2], [1], [1], [2], [0, 0, 0, 1, 1, 2], [0], [0]>} : vector<2x8x8xf32>, vector<2x8x8xf32>, vector<2x8x8xf32> -> vector<2x8x8xf32>
    "tpu.trace_stop"() : () -> ()
    %259 = vector.shape_cast %258 : vector<2x8x8xf32> to vector<16x8xf32>
    %260 = vector.extract_strided_slice %215 {offsets = [8, 0], sizes = [8, 32], strides = [1, 1]} : vector<32x32xf32> to vector<8x32xf32>
    %cst_105 = arith.constant dense<0.000000e+00> : vector<16x32xf32>
    %261 = tpu.matmul %259, %260, %cst_105 {dimension_numbers = #tpu.dot_dimension_numbers<[1], [0], [0], [1], [0, 0, 1, 1], [], []>} : vector<16x8xf32>, vector<8x32xf32>, vector<16x32xf32> -> vector<16x32xf32>
    %262 = arith.addf %239, %261 : vector<16x32xf32>
    %263 = vector.extract_strided_slice %213 {offsets = [0, 16], sizes = [16, 8], strides = [1, 1]} : vector<16x96xf32> to vector<16x8xf32>
    %264 = vector.shape_cast %263 : vector<16x8xf32> to vector<2x8x8xf32>
    %265 = vector.extract_strided_slice %213 {offsets = [0, 48], sizes = [16, 8], strides = [1, 1]} : vector<16x96xf32> to vector<16x8xf32>
    %266 = vector.shape_cast %265 : vector<16x8xf32> to vector<2x8x8xf32>
    %267 = vector.extract_strided_slice %213 {offsets = [0, 80], sizes = [16, 8], strides = [1, 1]} : vector<16x96xf32> to vector<16x8xf32>
    %268 = vector.shape_cast %267 : vector<16x8xf32> to vector<2x8x8xf32>
    "tpu.trace_start"() <{level = 10 : i32, message = "bqd,bkd->bqk"}> : () -> ()
    %cst_106 = arith.constant dense<0.000000e+00> : vector<2x8x8xf32>
    %269 = tpu.matmul %264, %266, %cst_106 {dimension_numbers = #tpu.dot_dimension_numbers<[2], [2], [1], [1], [0, 0, 0, 1, 1, 1], [0], [0]>} : vector<2x8x8xf32>, vector<2x8x8xf32>, vector<2x8x8xf32> -> vector<2x8x8xf32>
    "tpu.trace_stop"() : () -> ()
    %270 = arith.addf %269, %23 : vector<2x8x8xf32>
    %cst_107 = arith.constant dense<0xFF800000> : vector<2x8xf32>
    %271 = vector.multi_reduction <maximumf>, %270, %cst_107 [2] : vector<2x8x8xf32> to vector<2x8xf32>
    %272 = vector.shape_cast %271 : vector<2x8xf32> to vector<2x8x1xf32>
    %273 = vector.broadcast %272 : vector<2x8x1xf32> to vector<2x8x8xf32>
    %274 = arith.subf %270, %273 : vector<2x8x8xf32>
    %275 = math.exp %274 : vector<2x8x8xf32>
    %cst_108 = arith.constant dense<0.000000e+00> : vector<2x8xf32>
    %276 = vector.multi_reduction <add>, %275, %cst_108 [2] : vector<2x8x8xf32> to vector<2x8xf32>
    %277 = vector.shape_cast %276 : vector<2x8xf32> to vector<2x8x1xf32>
    %278 = tpu.reciprocal %277 {approx = true} : vector<2x8x1xf32> -> vector<2x8x1xf32>
    %279 = vector.broadcast %278 : vector<2x8x1xf32> to vector<2x8x8xf32>
    %280 = arith.mulf %275, %279 : vector<2x8x8xf32>
    "tpu.trace_start"() <{level = 10 : i32, message = "bqk,bkd->bqd"}> : () -> ()
    %cst_109 = arith.constant dense<0.000000e+00> : vector<2x8x8xf32>
    %281 = tpu.matmul %280, %268, %cst_109 {dimension_numbers = #tpu.dot_dimension_numbers<[2], [1], [1], [2], [0, 0, 0, 1, 1, 2], [0], [0]>} : vector<2x8x8xf32>, vector<2x8x8xf32>, vector<2x8x8xf32> -> vector<2x8x8xf32>
    "tpu.trace_stop"() : () -> ()
    %282 = vector.shape_cast %281 : vector<2x8x8xf32> to vector<16x8xf32>
    %283 = vector.extract_strided_slice %215 {offsets = [16, 0], sizes = [8, 32], strides = [1, 1]} : vector<32x32xf32> to vector<8x32xf32>
    %cst_110 = arith.constant dense<0.000000e+00> : vector<16x32xf32>
    %284 = tpu.matmul %282, %283, %cst_110 {dimension_numbers = #tpu.dot_dimension_numbers<[1], [0], [0], [1], [0, 0, 1, 1], [], []>} : vector<16x8xf32>, vector<8x32xf32>, vector<16x32xf32> -> vector<16x32xf32>
    %285 = arith.addf %262, %284 : vector<16x32xf32>
    %286 = vector.extract_strided_slice %213 {offsets = [0, 24], sizes = [16, 8], strides = [1, 1]} : vector<16x96xf32> to vector<16x8xf32>
    %287 = vector.shape_cast %286 : vector<16x8xf32> to vector<2x8x8xf32>
    %288 = vector.extract_strided_slice %213 {offsets = [0, 56], sizes = [16, 8], strides = [1, 1]} : vector<16x96xf32> to vector<16x8xf32>
    %289 = vector.shape_cast %288 : vector<16x8xf32> to vector<2x8x8xf32>
    %290 = vector.extract_strided_slice %213 {offsets = [0, 88], sizes = [16, 8], strides = [1, 1]} : vector<16x96xf32> to vector<16x8xf32>
    %291 = vector.shape_cast %290 : vector<16x8xf32> to vector<2x8x8xf32>
    "tpu.trace_start"() <{level = 10 : i32, message = "bqd,bkd->bqk"}> : () -> ()
    %cst_111 = arith.constant dense<0.000000e+00> : vector<2x8x8xf32>
    %292 = tpu.matmul %287, %289, %cst_111 {dimension_numbers = #tpu.dot_dimension_numbers<[2], [2], [1], [1], [0, 0, 0, 1, 1, 1], [0], [0]>} : vector<2x8x8xf32>, vector<2x8x8xf32>, vector<2x8x8xf32> -> vector<2x8x8xf32>
    "tpu.trace_stop"() : () -> ()
    %293 = arith.addf %292, %23 : vector<2x8x8xf32>
    %cst_112 = arith.constant dense<0xFF800000> : vector<2x8xf32>
    %294 = vector.multi_reduction <maximumf>, %293, %cst_112 [2] : vector<2x8x8xf32> to vector<2x8xf32>
    %295 = vector.shape_cast %294 : vector<2x8xf32> to vector<2x8x1xf32>
    %296 = vector.broadcast %295 : vector<2x8x1xf32> to vector<2x8x8xf32>
    %297 = arith.subf %293, %296 : vector<2x8x8xf32>
    %298 = math.exp %297 : vector<2x8x8xf32>
    %cst_113 = arith.constant dense<0.000000e+00> : vector<2x8xf32>
    %299 = vector.multi_reduction <add>, %298, %cst_113 [2] : vector<2x8x8xf32> to vector<2x8xf32>
    %300 = vector.shape_cast %299 : vector<2x8xf32> to vector<2x8x1xf32>
    %301 = tpu.reciprocal %300 {approx = true} : vector<2x8x1xf32> -> vector<2x8x1xf32>
    %302 = vector.broadcast %301 : vector<2x8x1xf32> to vector<2x8x8xf32>
    %303 = arith.mulf %298, %302 : vector<2x8x8xf32>
    "tpu.trace_start"() <{level = 10 : i32, message = "bqk,bkd->bqd"}> : () -> ()
    %cst_114 = arith.constant dense<0.000000e+00> : vector<2x8x8xf32>
    %304 = tpu.matmul %303, %291, %cst_114 {dimension_numbers = #tpu.dot_dimension_numbers<[2], [1], [1], [2], [0, 0, 0, 1, 1, 2], [0], [0]>} : vector<2x8x8xf32>, vector<2x8x8xf32>, vector<2x8x8xf32> -> vector<2x8x8xf32>
    "tpu.trace_stop"() : () -> ()
    %305 = vector.shape_cast %304 : vector<2x8x8xf32> to vector<16x8xf32>
    %306 = vector.extract_strided_slice %215 {offsets = [24, 0], sizes = [8, 32], strides = [1, 1]} : vector<32x32xf32> to vector<8x32xf32>
    %cst_115 = arith.constant dense<0.000000e+00> : vector<16x32xf32>
    %307 = tpu.matmul %305, %306, %cst_115 {dimension_numbers = #tpu.dot_dimension_numbers<[1], [0], [0], [1], [0, 0, 1, 1], [], []>} : vector<16x8xf32>, vector<8x32xf32>, vector<16x32xf32> -> vector<16x32xf32>
    %308 = arith.addf %285, %307 : vector<16x32xf32>
    %309 = arith.addf %206, %308 : vector<16x32xf32>
    %c1_116 = arith.constant 1 : index
    %c0_117 = arith.constant 0 : index
    %c0_118 = arith.constant 0 : index
    %310 = vector.load %arg7[%c1_116, %c0_117, %c0_118] : memref<2x1x32xf32, #tpu.memory_space<vmem>>, vector<1x1x32xf32>
    %311 = vector.shape_cast %310 : vector<1x1x32xf32> to vector<1x32xf32>
    %312 = vector.broadcast %311 : vector<1x32xf32> to vector<16x32xf32>
    %313 = arith.addf %309, %312 : vector<16x32xf32>
    %c1_119 = arith.constant 1 : index
    %c0_120 = arith.constant 0 : index
    %c0_121 = arith.constant 0 : index
    %314 = vector.load %arg8[%c1_119, %c0_120, %c0_121] : memref<2x1x32xf32, #tpu.memory_space<vmem>>, vector<1x1x32xf32>
    %315 = vector.shape_cast %314 : vector<1x1x32xf32> to vector<1x32xf32>
    %c1_122 = arith.constant 1 : index
    %c0_123 = arith.constant 0 : index
    %c0_124 = arith.constant 0 : index
    %316 = vector.load %arg9[%c1_122, %c0_123, %c0_124] : memref<2x1x32xf32, #tpu.memory_space<vmem>>, vector<1x1x32xf32>
    %317 = vector.shape_cast %316 : vector<1x1x32xf32> to vector<1x32xf32>
    %cst_125 = arith.constant dense<0.000000e+00> : vector<16xf32>
    %318 = vector.multi_reduction <add>, %313, %cst_125 [1] : vector<16x32xf32> to vector<16xf32>
    %319 = vector.shape_cast %318 : vector<16xf32> to vector<16x1xf32>
    %cst_126 = arith.constant 3.200000e+01 : f32
    %320 = vector.broadcast %cst_126 : f32 to vector<16x1xf32>
    %321 = arith.divf %319, %320 : vector<16x1xf32>
    %322 = vector.broadcast %321 : vector<16x1xf32> to vector<16x32xf32>
    %323 = arith.subf %313, %322 : vector<16x32xf32>
    %324 = arith.mulf %323, %323 : vector<16x32xf32>
    %cst_127 = arith.constant dense<0.000000e+00> : vector<16xf32>
    %325 = vector.multi_reduction <add>, %324, %cst_127 [1] : vector<16x32xf32> to vector<16xf32>
    %326 = vector.shape_cast %325 : vector<16xf32> to vector<16x1xf32>
    %cst_128 = arith.constant 3.200000e+01 : f32
    %327 = vector.broadcast %cst_128 : f32 to vector<16x1xf32>
    %328 = arith.divf %326, %327 : vector<16x1xf32>
    %cst_129 = arith.constant 9.99999996E-13 : f32
    %329 = vector.broadcast %cst_129 : f32 to vector<16x1xf32>
    %330 = arith.addf %328, %329 : vector<16x1xf32>
    %331 = math.rsqrt %330 : vector<16x1xf32>
    %332 = vector.broadcast %331 : vector<16x1xf32> to vector<16x32xf32>
    %333 = arith.mulf %323, %332 : vector<16x32xf32>
    %334 = vector.broadcast %315 : vector<1x32xf32> to vector<16x32xf32>
    %335 = arith.mulf %333, %334 : vector<16x32xf32>
    %336 = vector.broadcast %317 : vector<1x32xf32> to vector<16x32xf32>
    %337 = arith.addf %335, %336 : vector<16x32xf32>
    %c1_130 = arith.constant 1 : index
    %c0_131 = arith.constant 0 : index
    %c0_132 = arith.constant 0 : index
    %338 = vector.load %arg10[%c1_130, %c0_131, %c0_132] : memref<2x32x64xf32, #tpu.memory_space<vmem>>, vector<1x32x64xf32>
    %339 = vector.shape_cast %338 : vector<1x32x64xf32> to vector<32x64xf32>
    %cst_133 = arith.constant dense<0.000000e+00> : vector<16x64xf32>
    %340 = tpu.matmul %337, %339, %cst_133 {dimension_numbers = #tpu.dot_dimension_numbers<[1], [0], [0], [1], [0, 0, 1, 1], [], []>} : vector<16x32xf32>, vector<32x64xf32>, vector<16x64xf32> -> vector<16x64xf32>
    %c1_134 = arith.constant 1 : index
    %c0_135 = arith.constant 0 : index
    %c0_136 = arith.constant 0 : index
    %341 = vector.load %arg11[%c1_134, %c0_135, %c0_136] : memref<2x1x64xf32, #tpu.memory_space<vmem>>, vector<1x1x64xf32>
    %342 = vector.shape_cast %341 : vector<1x1x64xf32> to vector<1x64xf32>
    %343 = vector.broadcast %342 : vector<1x64xf32> to vector<16x64xf32>
    %344 = arith.addf %340, %343 : vector<16x64xf32>
    %cst_137 = arith.constant 5.000000e-01 : f32
    %345 = vector.broadcast %cst_137 : f32 to vector<16x64xf32>
    %346 = arith.mulf %345, %344 : vector<16x64xf32>
    %cst_138 = arith.constant 4.471500e-02 : f32
    %347 = vector.broadcast %cst_138 : f32 to vector<16x64xf32>
    %348 = arith.mulf %347, %344 : vector<16x64xf32>
    %349 = arith.mulf %348, %344 : vector<16x64xf32>
    %350 = arith.mulf %349, %344 : vector<16x64xf32>
    %351 = arith.addf %344, %350 : vector<16x64xf32>
    %cst_139 = arith.constant 0.797884583 : f32
    %352 = vector.broadcast %cst_139 : f32 to vector<16x64xf32>
    %353 = arith.mulf %352, %351 : vector<16x64xf32>
    %354 = math.tanh %353 : vector<16x64xf32>
    %cst_140 = arith.constant 1.000000e+00 : f32
    %355 = vector.broadcast %cst_140 : f32 to vector<16x64xf32>
    %356 = arith.addf %355, %354 : vector<16x64xf32>
    %357 = arith.mulf %346, %356 : vector<16x64xf32>
    %c1_141 = arith.constant 1 : index
    %c0_142 = arith.constant 0 : index
    %c0_143 = arith.constant 0 : index
    %358 = vector.load %arg12[%c1_141, %c0_142, %c0_143] : memref<2x64x32xf32, #tpu.memory_space<vmem>>, vector<1x64x32xf32>
    %359 = vector.shape_cast %358 : vector<1x64x32xf32> to vector<64x32xf32>
    %cst_144 = arith.constant dense<0.000000e+00> : vector<16x32xf32>
    %360 = tpu.matmul %357, %359, %cst_144 {dimension_numbers = #tpu.dot_dimension_numbers<[1], [0], [0], [1], [0, 0, 1, 1], [], []>} : vector<16x64xf32>, vector<64x32xf32>, vector<16x32xf32> -> vector<16x32xf32>
    %c1_145 = arith.constant 1 : index
    %c0_146 = arith.constant 0 : index
    %c0_147 = arith.constant 0 : index
    %361 = vector.load %arg13[%c1_145, %c0_146, %c0_147] : memref<2x1x32xf32, #tpu.memory_space<vmem>>, vector<1x1x32xf32>
    %362 = vector.shape_cast %361 : vector<1x1x32xf32> to vector<1x32xf32>
    %363 = vector.broadcast %362 : vector<1x32xf32> to vector<16x32xf32>
    %364 = arith.addf %360, %363 : vector<16x32xf32>
    %365 = arith.addf %337, %364 : vector<16x32xf32>
    %c1_148 = arith.constant 1 : index
    %c0_149 = arith.constant 0 : index
    %c0_150 = arith.constant 0 : index
    %366 = vector.load %arg14[%c1_148, %c0_149, %c0_150] : memref<2x1x32xf32, #tpu.memory_space<vmem>>, vector<1x1x32xf32>
    %367 = vector.shape_cast %366 : vector<1x1x32xf32> to vector<1x32xf32>
    %c1_151 = arith.constant 1 : index
    %c0_152 = arith.constant 0 : index
    %c0_153 = arith.constant 0 : index
    %368 = vector.load %arg15[%c1_151, %c0_152, %c0_153] : memref<2x1x32xf32, #tpu.memory_space<vmem>>, vector<1x1x32xf32>
    %369 = vector.shape_cast %368 : vector<1x1x32xf32> to vector<1x32xf32>
    %cst_154 = arith.constant dense<0.000000e+00> : vector<16xf32>
    %370 = vector.multi_reduction <add>, %365, %cst_154 [1] : vector<16x32xf32> to vector<16xf32>
    %371 = vector.shape_cast %370 : vector<16xf32> to vector<16x1xf32>
    %cst_155 = arith.constant 3.200000e+01 : f32
    %372 = vector.broadcast %cst_155 : f32 to vector<16x1xf32>
    %373 = arith.divf %371, %372 : vector<16x1xf32>
    %374 = vector.broadcast %373 : vector<16x1xf32> to vector<16x32xf32>
    %375 = arith.subf %365, %374 : vector<16x32xf32>
    %376 = arith.mulf %375, %375 : vector<16x32xf32>
    %cst_156 = arith.constant dense<0.000000e+00> : vector<16xf32>
    %377 = vector.multi_reduction <add>, %376, %cst_156 [1] : vector<16x32xf32> to vector<16xf32>
    %378 = vector.shape_cast %377 : vector<16xf32> to vector<16x1xf32>
    %cst_157 = arith.constant 3.200000e+01 : f32
    %379 = vector.broadcast %cst_157 : f32 to vector<16x1xf32>
    %380 = arith.divf %378, %379 : vector<16x1xf32>
    %cst_158 = arith.constant 9.99999996E-13 : f32
    %381 = vector.broadcast %cst_158 : f32 to vector<16x1xf32>
    %382 = arith.addf %380, %381 : vector<16x1xf32>
    %383 = math.rsqrt %382 : vector<16x1xf32>
    %384 = vector.broadcast %383 : vector<16x1xf32> to vector<16x32xf32>
    %385 = arith.mulf %375, %384 : vector<16x32xf32>
    %386 = vector.broadcast %367 : vector<1x32xf32> to vector<16x32xf32>
    %387 = arith.mulf %385, %386 : vector<16x32xf32>
    %388 = vector.broadcast %369 : vector<1x32xf32> to vector<16x32xf32>
    %389 = arith.addf %387, %388 : vector<16x32xf32>
    %390 = vector.shape_cast %389 : vector<16x32xf32> to vector<2x8x32xf32>
    %cst_159 = arith.constant dense<0.000000e+00> : vector<2x32xf32>
    %391 = vector.multi_reduction <add>, %390, %cst_159 [1] : vector<2x8x32xf32> to vector<2x32xf32>
    %cst_160 = arith.constant 8.000000e+00 : f32
    %392 = vector.broadcast %cst_160 : f32 to vector<2x32xf32>
    %393 = arith.divf %391, %392 : vector<2x32xf32>
    %c0_161 = arith.constant 0 : index
    %c0_162 = arith.constant 0 : index
    %394 = vector.load %arg16[%c0_161, %c0_162] : memref<32x128xf32, #tpu.memory_space<vmem>>, vector<32x128xf32>
    %cst_163 = arith.constant dense<0.000000e+00> : vector<2x128xf32>
    %395 = tpu.matmul %393, %394, %cst_163 {dimension_numbers = #tpu.dot_dimension_numbers<[1], [0], [0], [1], [0, 0, 1, 1], [], []>} : vector<2x32xf32>, vector<32x128xf32>, vector<2x128xf32> -> vector<2x128xf32>
    %c0_164 = arith.constant 0 : index
    %c0_165 = arith.constant 0 : index
    %396 = vector.load %arg17[%c0_164, %c0_165] : memref<1x128xf32, #tpu.memory_space<vmem>>, vector<1x128xf32>
    %397 = vector.broadcast %396 : vector<1x128xf32> to vector<2x128xf32>
    %398 = arith.addf %395, %397 : vector<2x128xf32>
    %c0_166 = arith.constant 0 : index
    %c0_167 = arith.constant 0 : index
    %399 = vector.load %arg18[%c0_166, %c0_167] : memref<2x128xf32, #tpu.memory_space<vmem>>, vector<2x128xf32>
    tpu.vector_store %arg18[%c0_166, %c0_167], %398 {strides = array<i32>} : memref<2x128xf32, #tpu.memory_space<vmem>>, vector<2x128xf32>,
    return
  }
}

</mosaic_0001>

<llo_original>
// kernel: bert_classifier_forward.1
$region0: #{bert_classifier_forward.1}
  #allocation0 [shape = 'u32[]', space=smem, size = 0x4, offset = 0x4, fixed_abs, tag = 'smem constant byte address 0x4 - core index']
  #allocation1 [shape = 'u32[72,128]{1,0:T(1,128)}', space=vmem, size = 0x9000, scoped, tag = 'internal scratch']
  %s0 = inlined_call_operand.vmem [shape: f32[16,32], index: 0, kind: input, shape index: {}]
  %s1 = inlined_call_operand.vmem [shape: f32[2,8,8], index: 1, kind: input, shape index: {}]
  %s2 = inlined_call_operand.vmem [shape: f32[1,32], index: 2, kind: input, shape index: {}]
  %s3 = inlined_call_operand.vmem [shape: f32[1,32], index: 3, kind: input, shape index: {}]
  %s4 = inlined_call_operand.vmem [shape: f32[2,32,96], index: 4, kind: input, shape index: {}]
  %s5 = inlined_call_operand.vmem [shape: f32[2,1,96], index: 5, kind: input, shape index: {}]
  %s6 = inlined_call_operand.vmem [shape: f32[2,32,32], index: 6, kind: input, shape index: {}]
  %s7 = inlined_call_operand.vmem [shape: f32[2,1,32], index: 7, kind: input, shape index: {}]
  %s8 = inlined_call_operand.vmem [shape: f32[2,1,32], index: 8, kind: input, shape index: {}]
  %s9 = inlined_call_operand.vmem [shape: f32[2,1,32], index: 9, kind: input, shape index: {}]
  %s10 = inlined_call_operand.vmem [shape: f32[2,32,64], index: 10, kind: input, shape index: {}]
  %s11 = inlined_call_operand.vmem [shape: f32[2,1,64], index: 11, kind: input, shape index: {}]
  %s12 = inlined_call_operand.vmem [shape: f32[2,64,32], index: 12, kind: input, shape index: {}]
  %s13 = inlined_call_operand.vmem [shape: f32[2,1,32], index: 13, kind: input, shape index: {}]
  %s14 = inlined_call_operand.vmem [shape: f32[2,1,32], index: 14, kind: input, shape index: {}]
  %s15 = inlined_call_operand.vmem [shape: f32[2,1,32], index: 15, kind: input, shape index: {}]
  %s16 = inlined_call_operand.vmem [shape: f32[32,128], index: 16, kind: input, shape index: {}]
  %s17 = inlined_call_operand.vmem [shape: f32[1,128], index: 17, kind: input, shape index: {}]
  %s18 = inlined_call_operand.hbm [shape: f32[2,128], index: 18, kind: output, shape index: {}]
  %s19 = sld [smem:[#allocation0]]
  $region82: #{bert_classifier_forward.1} parent=0
    _
  %s21 = ssub.s32 1, %s19
  %s22 = scalar_select 0, %s21, %s19
  $region1: #{bert_classifier_forward.1} parent=0
    #allocation2 [shape = 'u8[1024]{0}', space=vmem, size = 0x400, scoped, tag = 'output window, operand 0, single buffered']
    #allocation3 [shape = 's32[1]{0}', space=sflag, size = 0x4, scoped, tag = 'scoped memory for bert_classifier_forward.1']
    %23 = vsyncpa [#allocation3], 0
    // Predicated region
    $region2: #{bert_classifier_forward.1} parent=1 // pred_check
      _
    $region3: #{bert_classifier_forward.1} parent=1 // pred_check_branch
      %25 = sbr.rel (0) target = $region5
    $region4: #{bert_classifier_forward.1} parent=1 // pred_region
      _
    $region5: #{bert_classifier_forward.1} parent=1 // pred_fallthru
      _
    // Predicated region
    $region6: #{bert_classifier_forward.1} parent=1 // pred_check
      _
    $region7: #{bert_classifier_forward.1} parent=1 // pred_check_branch
      %27 = sbr.rel (0) target = $region9
    $region8: #{bert_classifier_forward.1} parent=1 // pred_region
      _
    $region9: #{bert_classifier_forward.1} parent=1 // pred_fallthru
      _
    // Predicated region
    $region10: #{bert_classifier_forward.1} parent=1 // pred_check
      _
    $region11: #{bert_classifier_forward.1} parent=1 // pred_check_branch
      %29 = sbr.rel (0) target = $region13
    $region12: #{bert_classifier_forward.1} parent=1 // pred_region
      _
    $region13: #{bert_classifier_forward.1} parent=1 // pred_fallthru
      _
    // Predicated region
    $region14: #{bert_classifier_forward.1} parent=1 // pred_check
      _
    $region15: #{bert_classifier_forward.1} parent=1 // pred_check_branch
      %31 = sbr.rel (0) target = $region17
    $region16: #{bert_classifier_forward.1} parent=1 // pred_region
      _
    $region17: #{bert_classifier_forward.1} parent=1 // pred_fallthru
      _
    // Predicated region
    $region18: #{bert_classifier_forward.1} parent=1 // pred_check
      _
    $region19: #{bert_classifier_forward.1} parent=1 // pred_check_branch
      %33 = sbr.rel (0) target = $region21
    $region20: #{bert_classifier_forward.1} parent=1 // pred_region
      _
    $region21: #{bert_classifier_forward.1} parent=1 // pred_fallthru
      _
    // Predicated region
    $region22: #{bert_classifier_forward.1} parent=1 // pred_check
      _
    $region23: #{bert_classifier_forward.1} parent=1 // pred_check_branch
      %35 = sbr.rel (0) target = $region25
    $region24: #{bert_classifier_forward.1} parent=1 // pred_region
      _
    $region25: #{bert_classifier_forward.1} parent=1 // pred_fallthru
      _
    // Predicated region
    $region26: #{bert_classifier_forward.1} parent=1 // pred_check
      _
    $region27: #{bert_classifier_forward.1} parent=1 // pred_check_branch
      %37 = sbr.rel (0) target = $region29
    $region28: #{bert_classifier_forward.1} parent=1 // pred_region
      _
    $region29: #{bert_classifier_forward.1} parent=1 // pred_fallthru
      _
    // Predicated region
    $region30: #{bert_classifier_forward.1} parent=1 // pred_check
      _
    $region31: #{bert_classifier_forward.1} parent=1 // pred_check_branch
      %39 = sbr.rel (0) target = $region33
    $region32: #{bert_classifier_forward.1} parent=1 // pred_region
      _
    $region33: #{bert_classifier_forward.1} parent=1 // pred_fallthru
      _
    // Predicated region
    $region34: #{bert_classifier_forward.1} parent=1 // pred_check
      _
    $region35: #{bert_classifier_forward.1} parent=1 // pred_check_branch
      %41 = sbr.rel (0) target = $region37
    $region36: #{bert_classifier_forward.1} parent=1 // pred_region
      _
    $region37: #{bert_classifier_forward.1} parent=1 // pred_fallthru
      _
    // Predicated region
    $region38: #{bert_classifier_forward.1} parent=1 // pred_check
      _
    $region39: #{bert_classifier_forward.1} parent=1 // pred_check_branch
      %43 = sbr.rel (0) target = $region41
    $region40: #{bert_classifier_forward.1} parent=1 // pred_region
      _
    $region41: #{bert_classifier_forward.1} parent=1 // pred_fallthru
      _
    // Predicated region
    $region42: #{bert_classifier_forward.1} parent=1 // pred_check
      _
    $region43: #{bert_classifier_forward.1} parent=1 // pred_check_branch
      %45 = sbr.rel (0) target = $region45
    $region44: #{bert_classifier_forward.1} parent=1 // pred_region
      _
    $region45: #{bert_classifier_forward.1} parent=1 // pred_fallthru
      _
    // Predicated region
    $region46: #{bert_classifier_forward.1} parent=1 // pred_check
      _
    $region47: #{bert_classifier_forward.1} parent=1 // pred_check_branch
      %47 = sbr.rel (0) target = $region49
    $region48: #{bert_classifier_forward.1} parent=1 // pred_region
      _
    $region49: #{bert_classifier_forward.1} parent=1 // pred_fallthru
      _
    // Predicated region
    $region50: #{bert_classifier_forward.1} parent=1 // pred_check
      _
    $region51: #{bert_classifier_forward.1} parent=1 // pred_check_branch
      %49 = sbr.rel (0) target = $region53
    $region52: #{bert_classifier_forward.1} parent=1 // pred_region
      _
    $region53: #{bert_classifier_forward.1} parent=1 // pred_fallthru
      _
    // Predicated region
    $region54: #{bert_classifier_forward.1} parent=1 // pred_check
      _
    $region55: #{bert_classifier_forward.1} parent=1 // pred_check_branch
      %51 = sbr.rel (0) target = $region57
    $region56: #{bert_classifier_forward.1} parent=1 // pred_region
      _
    $region57: #{bert_classifier_forward.1} parent=1 // pred_fallthru
      _
    // Predicated region
    $region58: #{bert_classifier_forward.1} parent=1 // pred_check
      _
    $region59: #{bert_classifier_forward.1} parent=1 // pred_check_branch
      %53 = sbr.rel (0) target = $region61
    $region60: #{bert_classifier_forward.1} parent=1 // pred_region
      _
    $region61: #{bert_classifier_forward.1} parent=1 // pred_fallthru
      _
    // Predicated region
    $region62: #{bert_classifier_forward.1} parent=1 // pred_check
      _
    $region63: #{bert_classifier_forward.1} parent=1 // pred_check_branch
      %55 = sbr.rel (0) target = $region65
    $region64: #{bert_classifier_forward.1} parent=1 // pred_region
      _
    $region65: #{bert_classifier_forward.1} parent=1 // pred_fallthru
      _
    // Predicated region
    $region66: #{bert_classifier_forward.1} parent=1 // pred_check
      _
    $region67: #{bert_classifier_forward.1} parent=1 // pred_check_branch
      %57 = sbr.rel (0) target = $region69
    $region68: #{bert_classifier_forward.1} parent=1 // pred_region
      _
    $region69: #{bert_classifier_forward.1} parent=1 // pred_fallthru
      _
    // Predicated region
    $region70: #{bert_classifier_forward.1} parent=1 // pred_check
      _
    $region71: #{bert_classifier_forward.1} parent=1 // pred_check_branch
      %59 = sbr.rel (0) target = $region73
    $region72: #{bert_classifier_forward.1} parent=1 // pred_region
      _
    $region73: #{bert_classifier_forward.1} parent=1 // pred_fallthru
      _
    %v60 = vld [vmem:[%s0] sm:$0xff]
    %v61 = vld [vmem:[%s0 + $0x8] sm:$0xff]
    %v62 = vld [vmem:[%s2] sm:$0x1]
    %v63 = vld [vmem:[%s3] sm:$0x1]
    %vm64 = vcmask 261120
    %v65 = vsel %vm64, %v60, 0.0
    %66 = vadd.xlane.f32.xlu0 %v65
    %v67 = vpop.xlane.xlu0 %66
    %v68 = vsel %vm64, %v61, 0.0
    %69 = vadd.xlane.f32.xlu0 %v68
    %v70 = vpop.xlane.xlu0 %69
    %v71 = vrcp.pop 32.0
    %v72 = vmul.f32 32.0, %v71
    %v73 = vsub.f32 1.0, %v72
    %v74 = vmul.f32 %v71, %v73
    %v75 = vadd.f32 %v71, %v74
    %vm76 = vweird.f32 %v71
    %v77 = vsel %vm76, %v71, %v75
    %v78 = vmul.f32 %v67, %v77
    %v79 = vmul.f32 %v70, %v77
    %v80 = vsub.f32 %v60, %v78
    %v81 = vsub.f32 %v61, %v79
    %v82 = vmul.f32 %v80, %v80
    %v83 = vmul.f32 %v81, %v81
    %v84 = vsel %vm64, %v82, 0.0
    %85 = vadd.xlane.f32.xlu0 %v84
    %v86 = vpop.xlane.xlu0 %85
    %v87 = vsel %vm64, %v83, 0.0
    %88 = vadd.xlane.f32.xlu0 %v87
    %v89 = vpop.xlane.xlu0 %88
    %v90 = vmul.f32 %v86, %v77
    %v91 = vmul.f32 %v89, %v77
    %v92 = vadd.f32 %v90, 1e-12
    %v93 = vadd.f32 %v91, 1e-12
    %v94 = vrsqrt.pop %v92
    %v95 = vmul.f32 %v94, %v92
    %v96 = vmul.f32 %v95, %v94
    %v97 = vmul.f32 0.5, %v96
    %v98 = vsub.f32 1.5, %v97
    %v99 = vmul.f32 %v94, %v98
    %vm100 = vweird.f32 %v92
    %vm101 = vweird.f32 %v94
    %vm102 = vmor %vm100, %vm101
    %v103 = vsel %vm102, %v94, %v99
    %v104 = vrsqrt.pop %v93
    %v105 = vmul.f32 %v104, %v93
    %v106 = vmul.f32 %v105, %v104
    %v107 = vmul.f32 0.5, %v106
    %v108 = vsub.f32 1.5, %v107
    %v109 = vmul.f32 %v104, %v108
    %vm110 = vweird.f32 %v93
    %vm111 = vweird.f32 %v104
    %vm112 = vmor %vm110, %vm111
    %v113 = vsel %vm112, %v104, %v109
    %v114 = vmul.f32 %v80, %v103
    %v115 = vmul.f32 %v81, %v113
    %v117 = vperm.slane %v62, 0
    %v119 = vmul.f32 %v114, %v117
    %v120 = vmul.f32 %v115, %v117
    %v122 = vperm.slane %v63, 0
    %v124 = vadd.f32 %v119, %v122
    %v125 = vadd.f32 %v120, %v122
    %v126 = vld [vmem:[%s1] sm:$0xff]
    %v127 = vld [vmem:[%s1 + $0x8] sm:$0xff]
    %v128 = vld [vmem:[%s4] sm:$0xff]
    %v129 = vld [vmem:[%s4 + $0x8] sm:$0xff]
    %v130 = vld [vmem:[%s4 + $0x10] sm:$0xff]
    %v131 = vld [vmem:[%s4 + $0x18] sm:$0xff]
    %v132 = vld [vmem:[%s5] sm:$0x1]
    %v134 = vperm.slane %v132, 0
    %v137 = vsel %vm64, %v124, 0
    %v140 = vsel %vm64, %v125, 0
    %142 = vmatpush.msra.mxu0 0.0
    %143 = vmatpush.msra.mxu0 0.0
    %144 = vmatpush.msra.mxu0 0.0
    %145 = vmatpush.msra.mxu0 0.0
    %146 = vmatpush.msra.mxu0 0.0
    %147 = vmatpush.msra.mxu0 0.0
    %148 = vmatpush.msra.mxu0 0.0
    %149 = vmatpush.msra.mxu0 0.0
    %150 = vmatpush.msra.mxu0 0.0
    %151 = vmatpush.msra.mxu0 0.0
    %152 = vmatpush.msra.mxu0 0.0
    %153 = vmatpush.msra.mxu0 0.0
    %154 = vmatpush.msra.mxu0 %v131
    %155 = vmatpush.msra.mxu0 %v130
    %156 = vmatpush.msra.mxu0 %v129
    %157 = vmatpush.msra.mxu0 %v128
    %158 = vmatmul.f32.gmra.mxu0 %v137
    %v159 = vpop.f32.mrf.mxu0
    %v160 = vadd.f32 %v134, %v159
    %161 = vmatmul.f32.gmra.mxu0 %v140
    %v162 = vpop.f32.mrf.mxu0
    %v163 = vadd.f32 %v134, %v162
    %164 = vdwg.mxu0
    %v165 = vld [vmem:[%s6] sm:$0xff]
    %v166 = vld [vmem:[%s6 + $0x8] sm:$0xff]
    %v167 = vld [vmem:[%s6 + $0x10] sm:$0xff]
    %v168 = vld [vmem:[%s6 + $0x18] sm:$0xff]
    %170 = vrot.lane.b32.xlu0 %v160, 96
    %v171 = vpop.permute.xlu0 %170
    %vm172 = vcmask 64512
    %v173 = vsel %vm172, %v160, 0
    %v175 = vsel %vm172, %v171, 0
    %177 = vmatpush.xpose.msra.mxu0 0.0
    %178 = vmatpush.xpose.msra.mxu0 0.0
    %179 = vmatpush.xpose.msra.mxu0 0.0
    %180 = vmatpush.xpose.msra.mxu0 0.0
    %181 = vmatpush.xpose.msra.mxu0 0.0
    %182 = vmatpush.xpose.msra.mxu0 0.0
    %183 = vmatpush.xpose.msra.mxu0 0.0
    %184 = vmatpush.xpose.msra.mxu0 0.0
    %185 = vmatpush.xpose.msra.mxu0 0.0
    %186 = vmatpush.xpose.msra.mxu0 0.0
    %187 = vmatpush.xpose.msra.mxu0 0.0
    %188 = vmatpush.xpose.msra.mxu0 0.0
    %189 = vmatpush.xpose.msra.mxu0 0.0
    %190 = vmatpush.xpose.msra.mxu0 0.0
    %191 = vmatpush.xpose.msra.mxu0 0.0
    %192 = vmatpush.xpose.msra.mxu0 %v175
    %193 = vmatmul.f32.gmra.mxu0 %v173
    %v194 = vpop.f32.mrf.mxu0
    %v195 = vadd.f32 %v126, %v194
    %196 = vdwg.mxu0
    %198 = vrot.lane.b32.xlu0 %v163, 96
    %v199 = vpop.permute.xlu0 %198
    %v200 = vsel %vm172, %v163, 0
    %v202 = vsel %vm172, %v199, 0
    %204 = vmatpush.xpose.msra.mxu0 0.0
    %205 = vmatpush.xpose.msra.mxu0 0.0
    %206 = vmatpush.xpose.msra.mxu0 0.0
    %207 = vmatpush.xpose.msra.mxu0 0.0
    %208 = vmatpush.xpose.msra.mxu0 0.0
    %209 = vmatpush.xpose.msra.mxu0 0.0
    %210 = vmatpush.xpose.msra.mxu0 0.0
    %211 = vmatpush.xpose.msra.mxu0 0.0
    %212 = vmatpush.xpose.msra.mxu0 0.0
    %213 = vmatpush.xpose.msra.mxu0 0.0
    %214 = vmatpush.xpose.msra.mxu0 0.0
    %215 = vmatpush.xpose.msra.mxu0 0.0
    %216 = vmatpush.xpose.msra.mxu0 0.0
    %217 = vmatpush.xpose.msra.mxu0 0.0
    %218 = vmatpush.xpose.msra.mxu0 0.0
    %219 = vmatpush.xpose.msra.mxu0 %v202
    %220 = vmatmul.f32.gmra.mxu0 %v200
    %v221 = vpop.f32.mrf.mxu0
    %v222 = vadd.f32 %v127, %v221
    %223 = vdwg.mxu0
    %v224 = vsel %vm172, %v195, -inf
    %225 = vmax.xlane.f32.xlu0 %v224
    %v226 = vpop.xlane.xlu0 %225
    %v227 = vsel %vm172, %v222, -inf
    %228 = vmax.xlane.f32.xlu0 %v227
    %v229 = vpop.xlane.xlu0 %228
    %v230 = vsub.f32 %v195, %v226
    %v231 = vsub.f32 %v222, %v229
    %v232 = vmul.f32 %v230, 1.442695
    %v233 = vpow.pop %v232
    %v234 = vmul.f32 %v231, 1.442695
    %v235 = vpow.pop %v234
    %v236 = vsel %vm172, %v233, 0.0
    %237 = vadd.xlane.f32.xlu0 %v236
    %v238 = vpop.xlane.xlu0 %237
    %v239 = vsel %vm172, %v235, 0.0
    %240 = vadd.xlane.f32.xlu0 %v239
    %v241 = vpop.xlane.xlu0 %240
    %v242 = vrcp.pop %v238
    %v243 = vrcp.pop %v241
    %v244 = vmul.f32 %v233, %v242
    %v245 = vmul.f32 %v235, %v243
    %246 = vrot.lane.b32.xlu0 %v160, 64
    %v247 = vpop.permute.xlu0 %246
    %v250 = vsel %vm172, %v244, 0
    %252 = vmatpush.msra.mxu0 0.0
    %253 = vmatpush.msra.mxu0 0.0
    %254 = vmatpush.msra.mxu0 0.0
    %255 = vmatpush.msra.mxu0 0.0
    %256 = vmatpush.msra.mxu0 0.0
    %257 = vmatpush.msra.mxu0 0.0
    %258 = vmatpush.msra.mxu0 0.0
    %259 = vmatpush.msra.mxu0 0.0
    %260 = vmatpush.msra.mxu0 0.0
    %261 = vmatpush.msra.mxu0 0.0
    %262 = vmatpush.msra.mxu0 0.0
    %263 = vmatpush.msra.mxu0 0.0
    %264 = vmatpush.msra.mxu0 0.0
    %265 = vmatpush.msra.mxu0 0.0
    %266 = vmatpush.msra.mxu0 0.0
    %267 = vmatpush.msra.mxu0 %v247
    %268 = vmatmul.f32.gmra.mxu0 %v250
    %v269 = vpop.f32.mrf.mxu0
    %v270 = vadd.f32 0.0, %v269
    %271 = vdwg.mxu0
    %272 = vrot.lane.b32.xlu0 %v163, 64
    %v273 = vpop.permute.xlu0 %272
    %v276 = vsel %vm172, %v245, 0
    %278 = vmatpush.msra.mxu0 0.0
    %279 = vmatpush.msra.mxu0 0.0
    %280 = vmatpush.msra.mxu0 0.0
    %281 = vmatpush.msra.mxu0 0.0
    %282 = vmatpush.msra.mxu0 0.0
    %283 = vmatpush.msra.mxu0 0.0
    %284 = vmatpush.msra.mxu0 0.0
    %285 = vmatpush.msra.mxu0 0.0
    %286 = vmatpush.msra.mxu0 0.0
    %287 = vmatpush.msra.mxu0 0.0
    %288 = vmatpush.msra.mxu0 0.0
    %289 = vmatpush.msra.mxu0 0.0
    %290 = vmatpush.msra.mxu0 0.0
    %291 = vmatpush.msra.mxu0 0.0
    %292 = vmatpush.msra.mxu0 0.0
    %293 = vmatpush.msra.mxu0 %v273
    %294 = vmatmul.f32.gmra.mxu0 %v276
    %v295 = vpop.f32.mrf.mxu0
    %v296 = vadd.f32 0.0, %v295
    %297 = vdwg.mxu0
    %298 = vrot.lane.b32.xlu0 %v160, 120
    %v299 = vpop.permute.xlu0 %298
    %300 = vrot.lane.b32.xlu0 %v160, 88
    %v301 = vpop.permute.xlu0 %300
    %v302 = vsel %vm172, %v299, 0
    %v304 = vsel %vm172, %v301, 0
    %306 = vmatpush.xpose.msra.mxu0 0.0
    %307 = vmatpush.xpose.msra.mxu0 0.0
    %308 = vmatpush.xpose.msra.mxu0 0.0
    %309 = vmatpush.xpose.msra.mxu0 0.0
    %310 = vmatpush.xpose.msra.mxu0 0.0
    %311 = vmatpush.xpose.msra.mxu0 0.0
    %312 = vmatpush.xpose.msra.mxu0 0.0
    %313 = vmatpush.xpose.msra.mxu0 0.0
    %314 = vmatpush.xpose.msra.mxu0 0.0
    %315 = vmatpush.xpose.msra.mxu0 0.0
    %316 = vmatpush.xpose.msra.mxu0 0.0
    %317 = vmatpush.xpose.msra.mxu0 0.0
    %318 = vmatpush.xpose.msra.mxu0 0.0
    %319 = vmatpush.xpose.msra.mxu0 0.0
    %320 = vmatpush.xpose.msra.mxu0 0.0
    %321 = vmatpush.xpose.msra.mxu0 %v304
    %322 = vmatmul.f32.gmra.mxu0 %v302
    %v323 = vpop.f32.mrf.mxu0
    %v324 = vadd.f32 %v126, %v323
    %325 = vdwg.mxu0
    %326 = vrot.lane.b32.xlu0 %v163, 120
    %v327 = vpop.permute.xlu0 %326
    %328 = vrot.lane.b32.xlu0 %v163, 88
    %v329 = vpop.permute.xlu0 %328
    %v330 = vsel %vm172, %v327, 0
    %v332 = vsel %vm172, %v329, 0
    %334 = vmatpush.xpose.msra.mxu0 0.0
    %335 = vmatpush.xpose.msra.mxu0 0.0
    %336 = vmatpush.xpose.msra.mxu0 0.0
    %337 = vmatpush.xpose.msra.mxu0 0.0
    %338 = vmatpush.xpose.msra.mxu0 0.0
    %339 = vmatpush.xpose.msra.mxu0 0.0
    %340 = vmatpush.xpose.msra.mxu0 0.0
    %341 = vmatpush.xpose.msra.mxu0 0.0
    %342 = vmatpush.xpose.msra.mxu0 0.0
    %343 = vmatpush.xpose.msra.mxu0 0.0
    %344 = vmatpush.xpose.msra.mxu0 0.0
    %345 = vmatpush.xpose.msra.mxu0 0.0
    %346 = vmatpush.xpose.msra.mxu0 0.0
    %347 = vmatpush.xpose.msra.mxu0 0.0
    %348 = vmatpush.xpose.msra.mxu0 0.0
    %349 = vmatpush.xpose.msra.mxu0 %v332
    %350 = vmatmul.f32.gmra.mxu0 %v330
    %v351 = vpop.f32.mrf.mxu0
    %v352 = vadd.f32 %v127, %v351
    %353 = vdwg.mxu0
    %v354 = vsel %vm172, %v324, -inf
    %355 = vmax.xlane.f32.xlu0 %v354
    %v356 = vpop.xlane.xlu0 %355
    %v357 = vsel %vm172, %v352, -inf
    %358 = vmax.xlane.f32.xlu0 %v357
    %v359 = vpop.xlane.xlu0 %358
    %v360 = vsub.f32 %v324, %v356
    %v361 = vsub.f32 %v352, %v359
    %v362 = vmul.f32 %v360, 1.442695
    %v363 = vpow.pop %v362
    %v364 = vmul.f32 %v361, 1.442695
    %v365 = vpow.pop %v364
    %v366 = vsel %vm172, %v363, 0.0
    %367 = vadd.xlane.f32.xlu0 %v366
    %v368 = vpop.xlane.xlu0 %367
    %v369 = vsel %vm172, %v365, 0.0
    %370 = vadd.xlane.f32.xlu0 %v369
    %v371 = vpop.xlane.xlu0 %370
    %v372 = vrcp.pop %v368
    %v373 = vrcp.pop %v371
    %v374 = vmul.f32 %v363, %v372
    %v375 = vmul.f32 %v365, %v373
    %376 = vrot.lane.b32.xlu0 %v160, 56
    %v377 = vpop.permute.xlu0 %376
    %v380 = vsel %vm172, %v374, 0
    %382 = vmatpush.msra.mxu0 0.0
    %383 = vmatpush.msra.mxu0 0.0
    %384 = vmatpush.msra.mxu0 0.0
    %385 = vmatpush.msra.mxu0 0.0
    %386 = vmatpush.msra.mxu0 0.0
    %387 = vmatpush.msra.mxu0 0.0
    %388 = vmatpush.msra.mxu0 0.0
    %389 = vmatpush.msra.mxu0 0.0
    %390 = vmatpush.msra.mxu0 0.0
    %391 = vmatpush.msra.mxu0 0.0
    %392 = vmatpush.msra.mxu0 0.0
    %393 = vmatpush.msra.mxu0 0.0
    %394 = vmatpush.msra.mxu0 0.0
    %395 = vmatpush.msra.mxu0 0.0
    %396 = vmatpush.msra.mxu0 0.0
    %397 = vmatpush.msra.mxu0 %v377
    %398 = vmatmul.f32.gmra.mxu0 %v380
    %v399 = vpop.f32.mrf.mxu0
    %v400 = vadd.f32 0.0, %v399
    %401 = vdwg.mxu0
    %402 = vrot.lane.b32.xlu0 %v163, 56
    %v403 = vpop.permute.xlu0 %402
    %v406 = vsel %vm172, %v375, 0
    %408 = vmatpush.msra.mxu0 0.0
    %409 = vmatpush.msra.mxu0 0.0
    %410 = vmatpush.msra.mxu0 0.0
    %411 = vmatpush.msra.mxu0 0.0
    %412 = vmatpush.msra.mxu0 0.0
    %413 = vmatpush.msra.mxu0 0.0
    %414 = vmatpush.msra.mxu0 0.0
    %415 = vmatpush.msra.mxu0 0.0
    %416 = vmatpush.msra.mxu0 0.0
    %417 = vmatpush.msra.mxu0 0.0
    %418 = vmatpush.msra.mxu0 0.0
    %419 = vmatpush.msra.mxu0 0.0
    %420 = vmatpush.msra.mxu0 0.0
    %421 = vmatpush.msra.mxu0 0.0
    %422 = vmatpush.msra.mxu0 0.0
    %423 = vmatpush.msra.mxu0 %v403
    %424 = vmatmul.f32.gmra.mxu0 %v406
    %v425 = vpop.f32.mrf.mxu0
    %v426 = vadd.f32 0.0, %v425
    %427 = vdwg.mxu0
    %v429 = vsel %vm172, %v400, 0
    %v432 = vsel %vm172, %v426, 0
    %434 = vmatpush.msra.mxu0 0.0
    %435 = vmatpush.msra.mxu0 0.0
    %436 = vmatpush.msra.mxu0 0.0
    %437 = vmatpush.msra.mxu0 0.0
    %438 = vmatpush.msra.mxu0 0.0
    %439 = vmatpush.msra.mxu0 0.0
    %440 = vmatpush.msra.mxu0 0.0
    %441 = vmatpush.msra.mxu0 0.0
    %442 = vmatpush.msra.mxu0 0.0
    %443 = vmatpush.msra.mxu0 0.0
    %444 = vmatpush.msra.mxu0 0.0
    %445 = vmatpush.msra.mxu0 0.0
    %446 = vmatpush.msra.mxu0 0.0
    %447 = vmatpush.msra.mxu0 0.0
    %448 = vmatpush.msra.mxu0 0.0
    %449 = vmatpush.msra.mxu0 %v166
    %450 = vmatmul.f32.gmra.mxu0 %v429
    %v451 = vpop.f32.mrf.mxu0
    %v452 = vadd.f32 0.0, %v451
    %453 = vmatmul.f32.gmra.mxu0 %v432
    %v454 = vpop.f32.mrf.mxu0
    %v455 = vadd.f32 0.0, %v454
    %456 = vdwg.mxu0
    %v458 = vsel %vm172, %v270, 0
    %v461 = vsel %vm172, %v296, 0
    %463 = vmatpush.msra.mxu0 0.0
    %464 = vmatpush.msra.mxu0 0.0
    %465 = vmatpush.msra.mxu0 0.0
    %466 = vmatpush.msra.mxu0 0.0
    %467 = vmatpush.msra.mxu0 0.0
    %468 = vmatpush.msra.mxu0 0.0
    %469 = vmatpush.msra.mxu0 0.0
    %470 = vmatpush.msra.mxu0 0.0
    %471 = vmatpush.msra.mxu0 0.0
    %472 = vmatpush.msra.mxu0 0.0
    %473 = vmatpush.msra.mxu0 0.0
    %474 = vmatpush.msra.mxu0 0.0
    %475 = vmatpush.msra.mxu0 0.0
    %476 = vmatpush.msra.mxu0 0.0
    %477 = vmatpush.msra.mxu0 0.0
    %478 = vmatpush.msra.mxu0 %v165
    %479 = vmatmul.f32.gmra.mxu0 %v458
    %v480 = vpop.f32.mrf.mxu0
    %v481 = vadd.f32 %v452, %v480
    %482 = vmatmul.f32.gmra.mxu0 %v461
    %v483 = vpop.f32.mrf.mxu0
    %v484 = vadd.f32 %v455, %v483
    %485 = vdwg.mxu0
    %486 = vrot.lane.b32.xlu0 %v160, 112
    %v487 = vpop.permute.xlu0 %486
    %488 = vrot.lane.b32.xlu0 %v160, 80
    %v489 = vpop.permute.xlu0 %488
    %v490 = vsel %vm172, %v487, 0
    %v492 = vsel %vm172, %v489, 0
    %494 = vmatpush.xpose.msra.mxu0 0.0
    %495 = vmatpush.xpose.msra.mxu0 0.0
    %496 = vmatpush.xpose.msra.mxu0 0.0
    %497 = vmatpush.xpose.msra.mxu0 0.0
    %498 = vmatpush.xpose.msra.mxu0 0.0
    %499 = vmatpush.xpose.msra.mxu0 0.0
    %500 = vmatpush.xpose.msra.mxu0 0.0
    %501 = vmatpush.xpose.msra.mxu0 0.0
    %502 = vmatpush.xpose.msra.mxu0 0.0
    %503 = vmatpush.xpose.msra.mxu0 0.0
    %504 = vmatpush.xpose.msra.mxu0 0.0
    %505 = vmatpush.xpose.msra.mxu0 0.0
    %506 = vmatpush.xpose.msra.mxu0 0.0
    %507 = vmatpush.xpose.msra.mxu0 0.0
    %508 = vmatpush.xpose.msra.mxu0 0.0
    %509 = vmatpush.xpose.msra.mxu0 %v492
    %510 = vmatmul.f32.gmra.mxu0 %v490
    %v511 = vpop.f32.mrf.mxu0
    %v512 = vadd.f32 %v126, %v511
    %513 = vdwg.mxu0
    %514 = vrot.lane.b32.xlu0 %v163, 112
    %v515 = vpop.permute.xlu0 %514
    %516 = vrot.lane.b32.xlu0 %v163, 80
    %v517 = vpop.permute.xlu0 %516
    %v518 = vsel %vm172, %v515, 0
    %v520 = vsel %vm172, %v517, 0
    %522 = vmatpush.xpose.msra.mxu0 0.0
    %523 = vmatpush.xpose.msra.mxu0 0.0
    %524 = vmatpush.xpose.msra.mxu0 0.0
    %525 = vmatpush.xpose.msra.mxu0 0.0
    %526 = vmatpush.xpose.msra.mxu0 0.0
    %527 = vmatpush.xpose.msra.mxu0 0.0
    %528 = vmatpush.xpose.msra.mxu0 0.0
    %529 = vmatpush.xpose.msra.mxu0 0.0
    %530 = vmatpush.xpose.msra.mxu0 0.0
    %531 = vmatpush.xpose.msra.mxu0 0.0
    %532 = vmatpush.xpose.msra.mxu0 0.0
    %533 = vmatpush.xpose.msra.mxu0 0.0
    %534 = vmatpush.xpose.msra.mxu0 0.0
    %535 = vmatpush.xpose.msra.mxu0 0.0
    %536 = vmatpush.xpose.msra.mxu0 0.0
    %537 = vmatpush.xpose.msra.mxu0 %v520
    %538 = vmatmul.f32.gmra.mxu0 %v518
    %v539 = vpop.f32.mrf.mxu0
    %v540 = vadd.f32 %v127, %v539
    %541 = vdwg.mxu0
    %v542 = vsel %vm172, %v512, -inf
    %543 = vmax.xlane.f32.xlu0 %v542
    %v544 = vpop.xlane.xlu0 %543
    %v545 = vsel %vm172, %v540, -inf
    %546 = vmax.xlane.f32.xlu0 %v545
    %v547 = vpop.xlane.xlu0 %546
    %v548 = vsub.f32 %v512, %v544
    %v549 = vsub.f32 %v540, %v547
    %v550 = vmul.f32 %v548, 1.442695
    %v551 = vpow.pop %v550
    %v552 = vmul.f32 %v549, 1.442695
    %v553 = vpow.pop %v552
    %v554 = vsel %vm172, %v551, 0.0
    %555 = vadd.xlane.f32.xlu0 %v554
    %v556 = vpop.xlane.xlu0 %555
    %v557 = vsel %vm172, %v553, 0.0
    %558 = vadd.xlane.f32.xlu0 %v557
    %v559 = vpop.xlane.xlu0 %558
    %v560 = vrcp.pop %v556
    %v561 = vrcp.pop %v559
    %v562 = vmul.f32 %v551, %v560
    %v563 = vmul.f32 %v553, %v561
    %564 = vrot.lane.b32.xlu0 %v160, 48
    %v565 = vpop.permute.xlu0 %564
    %v568 = vsel %vm172, %v562, 0
    %570 = vmatpush.msra.mxu0 0.0
    %571 = vmatpush.msra.mxu0 0.0
    %572 = vmatpush.msra.mxu0 0.0
    %573 = vmatpush.msra.mxu0 0.0
    %574 = vmatpush.msra.mxu0 0.0
    %575 = vmatpush.msra.mxu0 0.0
    %576 = vmatpush.msra.mxu0 0.0
    %577 = vmatpush.msra.mxu0 0.0
    %578 = vmatpush.msra.mxu0 0.0
    %579 = vmatpush.msra.mxu0 0.0
    %580 = vmatpush.msra.mxu0 0.0
    %581 = vmatpush.msra.mxu0 0.0
    %582 = vmatpush.msra.mxu0 0.0
    %583 = vmatpush.msra.mxu0 0.0
    %584 = vmatpush.msra.mxu0 0.0
    %585 = vmatpush.msra.mxu0 %v565
    %586 = vmatmul.f32.gmra.mxu0 %v568
    %v587 = vpop.f32.mrf.mxu0
    %v588 = vadd.f32 0.0, %v587
    %589 = vdwg.mxu0
    %590 = vrot.lane.b32.xlu0 %v163, 48
    %v591 = vpop.permute.xlu0 %590
    %v594 = vsel %vm172, %v563, 0
    %596 = vmatpush.msra.mxu0 0.0
    %597 = vmatpush.msra.mxu0 0.0
    %598 = vmatpush.msra.mxu0 0.0
    %599 = vmatpush.msra.mxu0 0.0
    %600 = vmatpush.msra.mxu0 0.0
    %601 = vmatpush.msra.mxu0 0.0
    %602 = vmatpush.msra.mxu0 0.0
    %603 = vmatpush.msra.mxu0 0.0
    %604 = vmatpush.msra.mxu0 0.0
    %605 = vmatpush.msra.mxu0 0.0
    %606 = vmatpush.msra.mxu0 0.0
    %607 = vmatpush.msra.mxu0 0.0
    %608 = vmatpush.msra.mxu0 0.0
    %609 = vmatpush.msra.mxu0 0.0
    %610 = vmatpush.msra.mxu0 0.0
    %611 = vmatpush.msra.mxu0 %v591
    %612 = vmatmul.f32.gmra.mxu0 %v594
    %v613 = vpop.f32.mrf.mxu0
    %v614 = vadd.f32 0.0, %v613
    %615 = vdwg.mxu0
    %v617 = vsel %vm172, %v588, 0
    %v620 = vsel %vm172, %v614, 0
    %622 = vmatpush.msra.mxu0 0.0
    %623 = vmatpush.msra.mxu0 0.0
    %624 = vmatpush.msra.mxu0 0.0
    %625 = vmatpush.msra.mxu0 0.0
    %626 = vmatpush.msra.mxu0 0.0
    %627 = vmatpush.msra.mxu0 0.0
    %628 = vmatpush.msra.mxu0 0.0
    %629 = vmatpush.msra.mxu0 0.0
    %630 = vmatpush.msra.mxu0 0.0
    %631 = vmatpush.msra.mxu0 0.0
    %632 = vmatpush.msra.mxu0 0.0
    %633 = vmatpush.msra.mxu0 0.0
    %634 = vmatpush.msra.mxu0 0.0
    %635 = vmatpush.msra.mxu0 0.0
    %636 = vmatpush.msra.mxu0 0.0
    %637 = vmatpush.msra.mxu0 %v167
    %638 = vmatmul.f32.gmra.mxu0 %v617
    %v639 = vpop.f32.mrf.mxu0
    %v640 = vadd.f32 0.0, %v639
    %641 = vmatmul.f32.gmra.mxu0 %v620
    %v642 = vpop.f32.mrf.mxu0
    %v643 = vadd.f32 0.0, %v642
    %644 = vdwg.mxu0
    %v645 = vadd.f32 %v481, %v640
    %v646 = vadd.f32 %v484, %v643
    %647 = vrot.lane.b32.xlu0 %v160, 104
    %v648 = vpop.permute.xlu0 %647
    %649 = vrot.lane.b32.xlu0 %v160, 72
    %v650 = vpop.permute.xlu0 %649
    %v651 = vsel %vm172, %v648, 0
    %v653 = vsel %vm172, %v650, 0
    %655 = vmatpush.xpose.msra.mxu0 0.0
    %656 = vmatpush.xpose.msra.mxu0 0.0
    %657 = vmatpush.xpose.msra.mxu0 0.0
    %658 = vmatpush.xpose.msra.mxu0 0.0
    %659 = vmatpush.xpose.msra.mxu0 0.0
    %660 = vmatpush.xpose.msra.mxu0 0.0
    %661 = vmatpush.xpose.msra.mxu0 0.0
    %662 = vmatpush.xpose.msra.mxu0 0.0
    %663 = vmatpush.xpose.msra.mxu0 0.0
    %664 = vmatpush.xpose.msra.mxu0 0.0
    %665 = vmatpush.xpose.msra.mxu0 0.0
    %666 = vmatpush.xpose.msra.mxu0 0.0
    %667 = vmatpush.xpose.msra.mxu0 0.0
    %668 = vmatpush.xpose.msra.mxu0 0.0
    %669 = vmatpush.xpose.msra.mxu0 0.0
    %670 = vmatpush.xpose.msra.mxu0 %v653
    %671 = vmatmul.f32.gmra.mxu0 %v651
    %v672 = vpop.f32.mrf.mxu0
    %v673 = vadd.f32 %v126, %v672
    %674 = vdwg.mxu0
    %675 = vrot.lane.b32.xlu0 %v163, 104
    %v676 = vpop.permute.xlu0 %675
    %677 = vrot.lane.b32.xlu0 %v163, 72
    %v678 = vpop.permute.xlu0 %677
    %v679 = vsel %vm172, %v676, 0
    %v681 = vsel %vm172, %v678, 0
    %683 = vmatpush.xpose.msra.mxu0 0.0
    %684 = vmatpush.xpose.msra.mxu0 0.0
    %685 = vmatpush.xpose.msra.mxu0 0.0
    %686 = vmatpush.xpose.msra.mxu0 0.0
    %687 = vmatpush.xpose.msra.mxu0 0.0
    %688 = vmatpush.xpose.msra.mxu0 0.0
    %689 = vmatpush.xpose.msra.mxu0 0.0
    %690 = vmatpush.xpose.msra.mxu0 0.0
    %691 = vmatpush.xpose.msra.mxu0 0.0
    %692 = vmatpush.xpose.msra.mxu0 0.0
    %693 = vmatpush.xpose.msra.mxu0 0.0
    %694 = vmatpush.xpose.msra.mxu0 0.0
    %695 = vmatpush.xpose.msra.mxu0 0.0
    %696 = vmatpush.xpose.msra.mxu0 0.0
    %697 = vmatpush.xpose.msra.mxu0 0.0
    %698 = vmatpush.xpose.msra.mxu0 %v681
    %699 = vmatmul.f32.gmra.mxu0 %v679
    %v700 = vpop.f32.mrf.mxu0
    %v701 = vadd.f32 %v127, %v700
    %702 = vdwg.mxu0
    %v703 = vsel %vm172, %v673, -inf
    %704 = vmax.xlane.f32.xlu0 %v703
    %v705 = vpop.xlane.xlu0 %704
    %v706 = vsel %vm172, %v701, -inf
    %707 = vmax.xlane.f32.xlu0 %v706
    %v708 = vpop.xlane.xlu0 %707
    %v709 = vsub.f32 %v673, %v705
    %v710 = vsub.f32 %v701, %v708
    %v711 = vmul.f32 %v709, 1.442695
    %v712 = vpow.pop %v711
    %v713 = vmul.f32 %v710, 1.442695
    %v714 = vpow.pop %v713
    %v715 = vsel %vm172, %v712, 0.0
    %716 = vadd.xlane.f32.xlu0 %v715
    %v717 = vpop.xlane.xlu0 %716
    %v718 = vsel %vm172, %v714, 0.0
    %719 = vadd.xlane.f32.xlu0 %v718
    %v720 = vpop.xlane.xlu0 %719
    %v721 = vrcp.pop %v717
    %v722 = vrcp.pop %v720
    %v723 = vmul.f32 %v712, %v721
    %v724 = vmul.f32 %v714, %v722
    %725 = vrot.lane.b32.xlu0 %v160, 40
    %v726 = vpop.permute.xlu0 %725
    %v729 = vsel %vm172, %v723, 0
    %731 = vmatpush.msra.mxu0 0.0
    %732 = vmatpush.msra.mxu0 0.0
    %733 = vmatpush.msra.mxu0 0.0
    %734 = vmatpush.msra.mxu0 0.0
    %735 = vmatpush.msra.mxu0 0.0
    %736 = vmatpush.msra.mxu0 0.0
    %737 = vmatpush.msra.mxu0 0.0
    %738 = vmatpush.msra.mxu0 0.0
    %739 = vmatpush.msra.mxu0 0.0
    %740 = vmatpush.msra.mxu0 0.0
    %741 = vmatpush.msra.mxu0 0.0
    %742 = vmatpush.msra.mxu0 0.0
    %743 = vmatpush.msra.mxu0 0.0
    %744 = vmatpush.msra.mxu0 0.0
    %745 = vmatpush.msra.mxu0 0.0
    %746 = vmatpush.msra.mxu0 %v726
    %747 = vmatmul.f32.gmra.mxu0 %v729
    %v748 = vpop.f32.mrf.mxu0
    %v749 = vadd.f32 0.0, %v748
    %750 = vdwg.mxu0
    %751 = vrot.lane.b32.xlu0 %v163, 40
    %v752 = vpop.permute.xlu0 %751
    %v755 = vsel %vm172, %v724, 0
    %757 = vmatpush.msra.mxu0 0.0
    %758 = vmatpush.msra.mxu0 0.0
    %759 = vmatpush.msra.mxu0 0.0
    %760 = vmatpush.msra.mxu0 0.0
    %761 = vmatpush.msra.mxu0 0.0
    %762 = vmatpush.msra.mxu0 0.0
    %763 = vmatpush.msra.mxu0 0.0
    %764 = vmatpush.msra.mxu0 0.0
    %765 = vmatpush.msra.mxu0 0.0
    %766 = vmatpush.msra.mxu0 0.0
    %767 = vmatpush.msra.mxu0 0.0
    %768 = vmatpush.msra.mxu0 0.0
    %769 = vmatpush.msra.mxu0 0.0
    %770 = vmatpush.msra.mxu0 0.0
    %771 = vmatpush.msra.mxu0 0.0
    %772 = vmatpush.msra.mxu0 %v752
    %773 = vmatmul.f32.gmra.mxu0 %v755
    %v774 = vpop.f32.mrf.mxu0
    %v775 = vadd.f32 0.0, %v774
    %776 = vdwg.mxu0
    %v778 = vsel %vm172, %v749, 0
    %v781 = vsel %vm172, %v775, 0
    %783 = vmatpush.msra.mxu0 0.0
    %784 = vmatpush.msra.mxu0 0.0
    %785 = vmatpush.msra.mxu0 0.0
    %786 = vmatpush.msra.mxu0 0.0
    %787 = vmatpush.msra.mxu0 0.0
    %788 = vmatpush.msra.mxu0 0.0
    %789 = vmatpush.msra.mxu0 0.0
    %790 = vmatpush.msra.mxu0 0.0
    %791 = vmatpush.msra.mxu0 0.0
    %792 = vmatpush.msra.mxu0 0.0
    %793 = vmatpush.msra.mxu0 0.0
    %794 = vmatpush.msra.mxu0 0.0
    %795 = vmatpush.msra.mxu0 0.0
    %796 = vmatpush.msra.mxu0 0.0
    %797 = vmatpush.msra.mxu0 0.0
    %798 = vmatpush.msra.mxu0 %v168
    %799 = vmatmul.f32.gmra.mxu0 %v778
    %v800 = vpop.f32.mrf.mxu0
    %v801 = vadd.f32 0.0, %v800
    %802 = vmatmul.f32.gmra.mxu0 %v781
    %v803 = vpop.f32.mrf.mxu0
    %v804 = vadd.f32 0.0, %v803
    %805 = vdwg.mxu0
    %v806 = vadd.f32 %v645, %v801
    %v807 = vadd.f32 %v646, %v804
    %v808 = vadd.f32 %v124, %v806
    %v809 = vadd.f32 %v125, %v807
    %v810 = vld [vmem:[%s7] sm:$0x1]
    %v812 = vperm.slane %v810, 0
    %v814 = vadd.f32 %v808, %v812
    %v815 = vadd.f32 %v809, %v812
    %v816 = vld [vmem:[%s8] sm:$0x1]
    %v817 = vld [vmem:[%s9] sm:$0x1]
    %v818 = vsel %vm64, %v814, 0.0
    %819 = vadd.xlane.f32.xlu0 %v818
    %v820 = vpop.xlane.xlu0 %819
    %v821 = vsel %vm64, %v815, 0.0
    %822 = vadd.xlane.f32.xlu0 %v821
    %v823 = vpop.xlane.xlu0 %822
    %v824 = vmul.f32 %v820, %v77
    %v825 = vmul.f32 %v823, %v77
    %v826 = vsub.f32 %v814, %v824
    %v827 = vsub.f32 %v815, %v825
    %v828 = vmul.f32 %v826, %v826
    %v829 = vmul.f32 %v827, %v827
    %v830 = vsel %vm64, %v828, 0.0
    %831 = vadd.xlane.f32.xlu0 %v830
    %v832 = vpop.xlane.xlu0 %831
    %v833 = vsel %vm64, %v829, 0.0
    %834 = vadd.xlane.f32.xlu0 %v833
    %v835 = vpop.xlane.xlu0 %834
    %v836 = vmul.f32 %v832, %v77
    %v837 = vmul.f32 %v835, %v77
    %v838 = vadd.f32 %v836, 1e-12
    %v839 = vadd.f32 %v837, 1e-12
    %v840 = vrsqrt.pop %v838
    %v841 = vmul.f32 %v840, %v838
    %v842 = vmul.f32 %v841, %v840
    %v843 = vmul.f32 0.5, %v842
    %v844 = vsub.f32 1.5, %v843
    %v845 = vmul.f32 %v840, %v844
    %vm846 = vweird.f32 %v838
    %vm847 = vweird.f32 %v840
    %vm848 = vmor %vm846, %vm847
    %v849 = vsel %vm848, %v840, %v845
    %v850 = vrsqrt.pop %v839
    %v851 = vmul.f32 %v850, %v839
    %v852 = vmul.f32 %v851, %v850
    %v853 = vmul.f32 0.5, %v852
    %v854 = vsub.f32 1.5, %v853
    %v855 = vmul.f32 %v850, %v854
    %vm856 = vweird.f32 %v839
    %vm857 = vweird.f32 %v850
    %vm858 = vmor %vm856, %vm857
    %v859 = vsel %vm858, %v850, %v855
    %v860 = vmul.f32 %v826, %v849
    %v861 = vmul.f32 %v827, %v859
    %v863 = vperm.slane %v816, 0
    %v865 = vmul.f32 %v860, %v863
    %v866 = vmul.f32 %v861, %v863
    %v868 = vperm.slane %v817, 0
    %v870 = vadd.f32 %v865, %v868
    %v871 = vadd.f32 %v866, %v868
    %v872 = vld [vmem:[%s10] sm:$0xff]
    %v873 = vld [vmem:[%s10 + $0x8] sm:$0xff]
    %v874 = vld [vmem:[%s10 + $0x10] sm:$0xff]
    %v875 = vld [vmem:[%s10 + $0x18] sm:$0xff]
    %v876 = vld [vmem:[%s11] sm:$0x1]
    %v878 = vperm.slane %v876, 0
    %v881 = vsel %vm64, %v870, 0
    %v884 = vsel %vm64, %v871, 0
    %886 = vmatpush.msra.mxu0 0.0
    %887 = vmatpush.msra.mxu0 0.0
    %888 = vmatpush.msra.mxu0 0.0
    %889 = vmatpush.msra.mxu0 0.0
    %890 = vmatpush.msra.mxu0 0.0
    %891 = vmatpush.msra.mxu0 0.0
    %892 = vmatpush.msra.mxu0 0.0
    %893 = vmatpush.msra.mxu0 0.0
    %894 = vmatpush.msra.mxu0 0.0
    %895 = vmatpush.msra.mxu0 0.0
    %896 = vmatpush.msra.mxu0 0.0
    %897 = vmatpush.msra.mxu0 0.0
    %898 = vmatpush.msra.mxu0 %v875
    %899 = vmatpush.msra.mxu0 %v874
    %900 = vmatpush.msra.mxu0 %v873
    %901 = vmatpush.msra.mxu0 %v872
    %902 = vmatmul.f32.gmra.mxu0 %v881
    %v903 = vpop.f32.mrf.mxu0
    %v904 = vadd.f32 %v878, %v903
    %905 = vmatmul.f32.gmra.mxu0 %v884
    %v906 = vpop.f32.mrf.mxu0
    %v907 = vadd.f32 %v878, %v906
    %908 = vdwg.mxu0
    %v909 = vmul.f32 %v904, 0.5
    %v910 = vmul.f32 %v907, 0.5
    %v911 = vmul.f32 %v904, 0.044715
    %v912 = vmul.f32 %v907, 0.044715
    %v913 = vmul.f32 %v911, %v904
    %v914 = vmul.f32 %v912, %v907
    %v915 = vmul.f32 %v913, %v904
    %v916 = vmul.f32 %v914, %v907
    %v917 = vadd.f32 %v904, %v915
    %v918 = vadd.f32 %v907, %v916
    %v919 = vmul.f32 %v917, 0.7978846
    %v920 = vmul.f32 %v918, 0.7978846
    %v921 = vtanh.pop %v919
    %v922 = vtanh.pop %v920
    %v923 = vadd.f32 %v921, 1.0
    %v924 = vadd.f32 %v922, 1.0
    %v925 = vmul.f32 %v909, %v923
    %v926 = vmul.f32 %v910, %v924
    %v927 = vld [vmem:[%s12] sm:$0xff]
    %v928 = vld [vmem:[%s12 + $0x8] sm:$0xff]
    %v929 = vld [vmem:[%s12 + $0x10] sm:$0xff]
    %v930 = vld [vmem:[%s12 + $0x18] sm:$0xff]
    %v931 = vld [vmem:[%s12 + $0x20] sm:$0xff]
    %v932 = vld [vmem:[%s12 + $0x28] sm:$0xff]
    %v933 = vld [vmem:[%s12 + $0x30] sm:$0xff]
    %v934 = vld [vmem:[%s12 + $0x38] sm:$0xff]
    %v935 = vld [vmem:[%s13] sm:$0x1]
    %v937 = vperm.slane %v935, 0
    %vm939 = vcmask 523264
    %v941 = vsel %vm939, %v925, 0
    %v944 = vsel %vm939, %v926, 0
    %946 = vmatpush.msra.mxu0 0.0
    %947 = vmatpush.msra.mxu0 0.0
    %948 = vmatpush.msra.mxu0 0.0
    %949 = vmatpush.msra.mxu0 0.0
    %950 = vmatpush.msra.mxu0 0.0
    %951 = vmatpush.msra.mxu0 0.0
    %952 = vmatpush.msra.mxu0 0.0
    %953 = vmatpush.msra.mxu0 0.0
    %954 = vmatpush.msra.mxu0 %v934
    %955 = vmatpush.msra.mxu0 %v933
    %956 = vmatpush.msra.mxu0 %v932
    %957 = vmatpush.msra.mxu0 %v931
    %958 = vmatpush.msra.mxu0 %v930
    %959 = vmatpush.msra.mxu0 %v929
    %960 = vmatpush.msra.mxu0 %v928
    %961 = vmatpush.msra.mxu0 %v927
    %962 = vmatmul.f32.gmra.mxu0 %v941
    %v963 = vpop.f32.mrf.mxu0
    %v964 = vadd.f32 %v937, %v963
    %965 = vmatmul.f32.gmra.mxu0 %v944
    %v966 = vpop.f32.mrf.mxu0
    %v967 = vadd.f32 %v937, %v966
    %968 = vdwg.mxu0
    %v969 = vadd.f32 %v870, %v964
    %v970 = vadd.f32 %v871, %v967
    %v971 = vld [vmem:[%s14] sm:$0x1]
    %v972 = vld [vmem:[%s15] sm:$0x1]
    %v973 = vsel %vm64, %v969, 0.0
    %974 = vadd.xlane.f32.xlu0 %v973
    %v975 = vpop.xlane.xlu0 %974
    %v976 = vsel %vm64, %v970, 0.0
    %977 = vadd.xlane.f32.xlu0 %v976
    %v978 = vpop.xlane.xlu0 %977
    %v979 = vmul.f32 %v975, %v77
    %v980 = vmul.f32 %v978, %v77
    %v981 = vsub.f32 %v969, %v979
    %v982 = vsub.f32 %v970, %v980
    %v983 = vmul.f32 %v981, %v981
    %v984 = vmul.f32 %v982, %v982
    %v985 = vsel %vm64, %v983, 0.0
    %986 = vadd.xlane.f32.xlu0 %v985
    %v987 = vpop.xlane.xlu0 %986
    %v988 = vsel %vm64, %v984, 0.0
    %989 = vadd.xlane.f32.xlu0 %v988
    %v990 = vpop.xlane.xlu0 %989
    %v991 = vmul.f32 %v987, %v77
    %v992 = vmul.f32 %v990, %v77
    %v993 = vadd.f32 %v991, 1e-12
    %v994 = vadd.f32 %v992, 1e-12
    %v995 = vrsqrt.pop %v993
    %v996 = vmul.f32 %v995, %v993
    %v997 = vmul.f32 %v996, %v995
    %v998 = vmul.f32 0.5, %v997
    %v999 = vsub.f32 1.5, %v998
    %v1000 = vmul.f32 %v995, %v999
    %vm1001 = vweird.f32 %v993
    %vm1002 = vweird.f32 %v995
    %vm1003 = vmor %vm1001, %vm1002
    %v1004 = vsel %vm1003, %v995, %v1000
    %v1005 = vrsqrt.pop %v994
    %v1006 = vmul.f32 %v1005, %v994
    %v1007 = vmul.f32 %v1006, %v1005
    %v1008 = vmul.f32 0.5, %v1007
    %v1009 = vsub.f32 1.5, %v1008
    %v1010 = vmul.f32 %v1005, %v1009
    %vm1011 = vweird.f32 %v994
    %vm1012 = vweird.f32 %v1005
    %vm1013 = vmor %vm1011, %vm1012
    %v1014 = vsel %vm1013, %v1005, %v1010
    %v1015 = vmul.f32 %v981, %v1004
    %v1016 = vmul.f32 %v982, %v1014
    %v1018 = vperm.slane %v971, 0
    %v1020 = vmul.f32 %v1015, %v1018
    %v1021 = vmul.f32 %v1016, %v1018
    %v1023 = vperm.slane %v972, 0
    %v1025 = vadd.f32 %v1020, %v1023
    %v1026 = vadd.f32 %v1021, %v1023
    %s1027 = scalar_lea.vmem %s4, 32
    %v1028 = vld [vmem:[%s1027] sm:$0xff]
    %v1029 = vld [vmem:[%s1027 + $0x8] sm:$0xff]
    %v1030 = vld [vmem:[%s1027 + $0x10] sm:$0xff]
    %v1031 = vld [vmem:[%s1027 + $0x18] sm:$0xff]
    %s1032 = scalar_lea.vmem %s5, 1
    %v1033 = vld [vmem:[%s1032] sm:$0x1]
    %v1035 = vperm.slane %v1033, 0
    %v1038 = vsel %vm64, %v1025, 0
    %v1041 = vsel %vm64, %v1026, 0
    %1043 = vmatpush.msra.mxu0 0.0
    %1044 = vmatpush.msra.mxu0 0.0
    %1045 = vmatpush.msra.mxu0 0.0
    %1046 = vmatpush.msra.mxu0 0.0
    %1047 = vmatpush.msra.mxu0 0.0
    %1048 = vmatpush.msra.mxu0 0.0
    %1049 = vmatpush.msra.mxu0 0.0
    %1050 = vmatpush.msra.mxu0 0.0
    %1051 = vmatpush.msra.mxu0 0.0
    %1052 = vmatpush.msra.mxu0 0.0
    %1053 = vmatpush.msra.mxu0 0.0
    %1054 = vmatpush.msra.mxu0 0.0
    %1055 = vmatpush.msra.mxu0 %v1031
    %1056 = vmatpush.msra.mxu0 %v1030
    %1057 = vmatpush.msra.mxu0 %v1029
    %1058 = vmatpush.msra.mxu0 %v1028
    %1059 = vmatmul.f32.gmra.mxu0 %v1038
    %v1060 = vpop.f32.mrf.mxu0
    %v1061 = vadd.f32 %v1035, %v1060
    %1062 = vmatmul.f32.gmra.mxu0 %v1041
    %v1063 = vpop.f32.mrf.mxu0
    %v1064 = vadd.f32 %v1035, %v1063
    %1065 = vdwg.mxu0
    %s1066 = scalar_lea.vmem %s6, 32
    %v1067 = vld [vmem:[%s1066] sm:$0xff]
    %v1068 = vld [vmem:[%s1066 + $0x8] sm:$0xff]
    %v1069 = vld [vmem:[%s1066 + $0x10] sm:$0xff]
    %v1070 = vld [vmem:[%s1066 + $0x18] sm:$0xff]
    %1072 = vrot.lane.b32.xlu0 %v1061, 96
    %v1073 = vpop.permute.xlu0 %1072
    %v1074 = vsel %vm172, %v1061, 0
    %v1076 = vsel %vm172, %v1073, 0
    %1078 = vmatpush.xpose.msra.mxu0 0.0
    %1079 = vmatpush.xpose.msra.mxu0 0.0
    %1080 = vmatpush.xpose.msra.mxu0 0.0
    %1081 = vmatpush.xpose.msra.mxu0 0.0
    %1082 = vmatpush.xpose.msra.mxu0 0.0
    %1083 = vmatpush.xpose.msra.mxu0 0.0
    %1084 = vmatpush.xpose.msra.mxu0 0.0
    %1085 = vmatpush.xpose.msra.mxu0 0.0
    %1086 = vmatpush.xpose.msra.mxu0 0.0
    %1087 = vmatpush.xpose.msra.mxu0 0.0
    %1088 = vmatpush.xpose.msra.mxu0 0.0
    %1089 = vmatpush.xpose.msra.mxu0 0.0
    %1090 = vmatpush.xpose.msra.mxu0 0.0
    %1091 = vmatpush.xpose.msra.mxu0 0.0
    %1092 = vmatpush.xpose.msra.mxu0 0.0
    %1093 = vmatpush.xpose.msra.mxu0 %v1076
    %1094 = vmatmul.f32.gmra.mxu0 %v1074
    %v1095 = vpop.f32.mrf.mxu0
    %v1096 = vadd.f32 %v126, %v1095
    %1097 = vdwg.mxu0
    %1099 = vrot.lane.b32.xlu0 %v1064, 96
    %v1100 = vpop.permute.xlu0 %1099
    %v1101 = vsel %vm172, %v1064, 0
    %v1103 = vsel %vm172, %v1100, 0
    %1105 = vmatpush.xpose.msra.mxu0 0.0
    %1106 = vmatpush.xpose.msra.mxu0 0.0
    %1107 = vmatpush.xpose.msra.mxu0 0.0
    %1108 = vmatpush.xpose.msra.mxu0 0.0
    %1109 = vmatpush.xpose.msra.mxu0 0.0
    %1110 = vmatpush.xpose.msra.mxu0 0.0
    %1111 = vmatpush.xpose.msra.mxu0 0.0
    %1112 = vmatpush.xpose.msra.mxu0 0.0
    %1113 = vmatpush.xpose.msra.mxu0 0.0
    %1114 = vmatpush.xpose.msra.mxu0 0.0
    %1115 = vmatpush.xpose.msra.mxu0 0.0
    %1116 = vmatpush.xpose.msra.mxu0 0.0
    %1117 = vmatpush.xpose.msra.mxu0 0.0
    %1118 = vmatpush.xpose.msra.mxu0 0.0
    %1119 = vmatpush.xpose.msra.mxu0 0.0
    %1120 = vmatpush.xpose.msra.mxu0 %v1103
    %1121 = vmatmul.f32.gmra.mxu0 %v1101
    %v1122 = vpop.f32.mrf.mxu0
    %v1123 = vadd.f32 %v127, %v1122
    %1124 = vdwg.mxu0
    %v1125 = vsel %vm172, %v1096, -inf
    %1126 = vmax.xlane.f32.xlu0 %v1125
    %v1127 = vpop.xlane.xlu0 %1126
    %v1128 = vsel %vm172, %v1123, -inf
    %1129 = vmax.xlane.f32.xlu0 %v1128
    %v1130 = vpop.xlane.xlu0 %1129
    %v1131 = vsub.f32 %v1096, %v1127
    %v1132 = vsub.f32 %v1123, %v1130
    %v1133 = vmul.f32 %v1131, 1.442695
    %v1134 = vpow.pop %v1133
    %v1135 = vmul.f32 %v1132, 1.442695
    %v1136 = vpow.pop %v1135
    %v1137 = vsel %vm172, %v1134, 0.0
    %1138 = vadd.xlane.f32.xlu0 %v1137
    %v1139 = vpop.xlane.xlu0 %1138
    %v1140 = vsel %vm172, %v1136, 0.0
    %1141 = vadd.xlane.f32.xlu0 %v1140
    %v1142 = vpop.xlane.xlu0 %1141
    %v1143 = vrcp.pop %v1139
    %v1144 = vrcp.pop %v1142
    %v1145 = vmul.f32 %v1134, %v1143
    %v1146 = vmul.f32 %v1136, %v1144
    %1147 = vrot.lane.b32.xlu0 %v1061, 64
    %v1148 = vpop.permute.xlu0 %1147
    %v1151 = vsel %vm172, %v1145, 0
    %1153 = vmatpush.msra.mxu0 0.0
    %1154 = vmatpush.msra.mxu0 0.0
    %1155 = vmatpush.msra.mxu0 0.0
    %1156 = vmatpush.msra.mxu0 0.0
    %1157 = vmatpush.msra.mxu0 0.0
    %1158 = vmatpush.msra.mxu0 0.0
    %1159 = vmatpush.msra.mxu0 0.0
    %1160 = vmatpush.msra.mxu0 0.0
    %1161 = vmatpush.msra.mxu0 0.0
    %1162 = vmatpush.msra.mxu0 0.0
    %1163 = vmatpush.msra.mxu0 0.0
    %1164 = vmatpush.msra.mxu0 0.0
    %1165 = vmatpush.msra.mxu0 0.0
    %1166 = vmatpush.msra.mxu0 0.0
    %1167 = vmatpush.msra.mxu0 0.0
    %1168 = vmatpush.msra.mxu0 %v1148
    %1169 = vmatmul.f32.gmra.mxu0 %v1151
    %v1170 = vpop.f32.mrf.mxu0
    %v1171 = vadd.f32 0.0, %v1170
    %1172 = vdwg.mxu0
    %1173 = vrot.lane.b32.xlu0 %v1064, 64
    %v1174 = vpop.permute.xlu0 %1173
    %v1177 = vsel %vm172, %v1146, 0
    %1179 = vmatpush.msra.mxu0 0.0
    %1180 = vmatpush.msra.mxu0 0.0
    %1181 = vmatpush.msra.mxu0 0.0
    %1182 = vmatpush.msra.mxu0 0.0
    %1183 = vmatpush.msra.mxu0 0.0
    %1184 = vmatpush.msra.mxu0 0.0
    %1185 = vmatpush.msra.mxu0 0.0
    %1186 = vmatpush.msra.mxu0 0.0
    %1187 = vmatpush.msra.mxu0 0.0
    %1188 = vmatpush.msra.mxu0 0.0
    %1189 = vmatpush.msra.mxu0 0.0
    %1190 = vmatpush.msra.mxu0 0.0
    %1191 = vmatpush.msra.mxu0 0.0
    %1192 = vmatpush.msra.mxu0 0.0
    %1193 = vmatpush.msra.mxu0 0.0
    %1194 = vmatpush.msra.mxu0 %v1174
    %1195 = vmatmul.f32.gmra.mxu0 %v1177
    %v1196 = vpop.f32.mrf.mxu0
    %v1197 = vadd.f32 0.0, %v1196
    %1198 = vdwg.mxu0
    %1199 = vrot.lane.b32.xlu0 %v1061, 120
    %v1200 = vpop.permute.xlu0 %1199
    %1201 = vrot.lane.b32.xlu0 %v1061, 88
    %v1202 = vpop.permute.xlu0 %1201
    %v1203 = vsel %vm172, %v1200, 0
    %v1205 = vsel %vm172, %v1202, 0
    %1207 = vmatpush.xpose.msra.mxu0 0.0
    %1208 = vmatpush.xpose.msra.mxu0 0.0
    %1209 = vmatpush.xpose.msra.mxu0 0.0
    %1210 = vmatpush.xpose.msra.mxu0 0.0
    %1211 = vmatpush.xpose.msra.mxu0 0.0
    %1212 = vmatpush.xpose.msra.mxu0 0.0
    %1213 = vmatpush.xpose.msra.mxu0 0.0
    %1214 = vmatpush.xpose.msra.mxu0 0.0
    %1215 = vmatpush.xpose.msra.mxu0 0.0
    %1216 = vmatpush.xpose.msra.mxu0 0.0
    %1217 = vmatpush.xpose.msra.mxu0 0.0
    %1218 = vmatpush.xpose.msra.mxu0 0.0
    %1219 = vmatpush.xpose.msra.mxu0 0.0
    %1220 = vmatpush.xpose.msra.mxu0 0.0
    %1221 = vmatpush.xpose.msra.mxu0 0.0
    %1222 = vmatpush.xpose.msra.mxu0 %v1205
    %1223 = vmatmul.f32.gmra.mxu0 %v1203
    %v1224 = vpop.f32.mrf.mxu0
    %v1225 = vadd.f32 %v126, %v1224
    %1226 = vdwg.mxu0
    %1227 = vrot.lane.b32.xlu0 %v1064, 120
    %v1228 = vpop.permute.xlu0 %1227
    %1229 = vrot.lane.b32.xlu0 %v1064, 88
    %v1230 = vpop.permute.xlu0 %1229
    %v1231 = vsel %vm172, %v1228, 0
    %v1233 = vsel %vm172, %v1230, 0
    %1235 = vmatpush.xpose.msra.mxu0 0.0
    %1236 = vmatpush.xpose.msra.mxu0 0.0
    %1237 = vmatpush.xpose.msra.mxu0 0.0
    %1238 = vmatpush.xpose.msra.mxu0 0.0
    %1239 = vmatpush.xpose.msra.mxu0 0.0
    %1240 = vmatpush.xpose.msra.mxu0 0.0
    %1241 = vmatpush.xpose.msra.mxu0 0.0
    %1242 = vmatpush.xpose.msra.mxu0 0.0
    %1243 = vmatpush.xpose.msra.mxu0 0.0
    %1244 = vmatpush.xpose.msra.mxu0 0.0
    %1245 = vmatpush.xpose.msra.mxu0 0.0
    %1246 = vmatpush.xpose.msra.mxu0 0.0
    %1247 = vmatpush.xpose.msra.mxu0 0.0
    %1248 = vmatpush.xpose.msra.mxu0 0.0
    %1249 = vmatpush.xpose.msra.mxu0 0.0
    %1250 = vmatpush.xpose.msra.mxu0 %v1233
    %1251 = vmatmul.f32.gmra.mxu0 %v1231
    %v1252 = vpop.f32.mrf.mxu0
    %v1253 = vadd.f32 %v127, %v1252
    %1254 = vdwg.mxu0
    %v1255 = vsel %vm172, %v1225, -inf
    %1256 = vmax.xlane.f32.xlu0 %v1255
    %v1257 = vpop.xlane.xlu0 %1256
    %v1258 = vsel %vm172, %v1253, -inf
    %1259 = vmax.xlane.f32.xlu0 %v1258
    %v1260 = vpop.xlane.xlu0 %1259
    %v1261 = vsub.f32 %v1225, %v1257
    %v1262 = vsub.f32 %v1253, %v1260
    %v1263 = vmul.f32 %v1261, 1.442695
    %v1264 = vpow.pop %v1263
    %v1265 = vmul.f32 %v1262, 1.442695
    %v1266 = vpow.pop %v1265
    %v1267 = vsel %vm172, %v1264, 0.0
    %1268 = vadd.xlane.f32.xlu0 %v1267
    %v1269 = vpop.xlane.xlu0 %1268
    %v1270 = vsel %vm172, %v1266, 0.0
    %1271 = vadd.xlane.f32.xlu0 %v1270
    %v1272 = vpop.xlane.xlu0 %1271
    %v1273 = vrcp.pop %v1269
    %v1274 = vrcp.pop %v1272
    %v1275 = vmul.f32 %v1264, %v1273
    %v1276 = vmul.f32 %v1266, %v1274
    %1277 = vrot.lane.b32.xlu0 %v1061, 56
    %v1278 = vpop.permute.xlu0 %1277
    %v1281 = vsel %vm172, %v1275, 0
    %1283 = vmatpush.msra.mxu0 0.0
    %1284 = vmatpush.msra.mxu0 0.0
    %1285 = vmatpush.msra.mxu0 0.0
    %1286 = vmatpush.msra.mxu0 0.0
    %1287 = vmatpush.msra.mxu0 0.0
    %1288 = vmatpush.msra.mxu0 0.0
    %1289 = vmatpush.msra.mxu0 0.0
    %1290 = vmatpush.msra.mxu0 0.0
    %1291 = vmatpush.msra.mxu0 0.0
    %1292 = vmatpush.msra.mxu0 0.0
    %1293 = vmatpush.msra.mxu0 0.0
    %1294 = vmatpush.msra.mxu0 0.0
    %1295 = vmatpush.msra.mxu0 0.0
    %1296 = vmatpush.msra.mxu0 0.0
    %1297 = vmatpush.msra.mxu0 0.0
    %1298 = vmatpush.msra.mxu0 %v1278
    %1299 = vmatmul.f32.gmra.mxu0 %v1281
    %v1300 = vpop.f32.mrf.mxu0
    %v1301 = vadd.f32 0.0, %v1300
    %1302 = vdwg.mxu0
    %1303 = vrot.lane.b32.xlu0 %v1064, 56
    %v1304 = vpop.permute.xlu0 %1303
    %v1307 = vsel %vm172, %v1276, 0
    %1309 = vmatpush.msra.mxu0 0.0
    %1310 = vmatpush.msra.mxu0 0.0
    %1311 = vmatpush.msra.mxu0 0.0
    %1312 = vmatpush.msra.mxu0 0.0
    %1313 = vmatpush.msra.mxu0 0.0
    %1314 = vmatpush.msra.mxu0 0.0
    %1315 = vmatpush.msra.mxu0 0.0
    %1316 = vmatpush.msra.mxu0 0.0
    %1317 = vmatpush.msra.mxu0 0.0
    %1318 = vmatpush.msra.mxu0 0.0
    %1319 = vmatpush.msra.mxu0 0.0
    %1320 = vmatpush.msra.mxu0 0.0
    %1321 = vmatpush.msra.mxu0 0.0
    %1322 = vmatpush.msra.mxu0 0.0
    %1323 = vmatpush.msra.mxu0 0.0
    %1324 = vmatpush.msra.mxu0 %v1304
    %1325 = vmatmul.f32.gmra.mxu0 %v1307
    %v1326 = vpop.f32.mrf.mxu0
    %v1327 = vadd.f32 0.0, %v1326
    %1328 = vdwg.mxu0
    %v1330 = vsel %vm172, %v1301, 0
    %v1333 = vsel %vm172, %v1327, 0
    %1335 = vmatpush.msra.mxu0 0.0
    %1336 = vmatpush.msra.mxu0 0.0
    %1337 = vmatpush.msra.mxu0 0.0
    %1338 = vmatpush.msra.mxu0 0.0
    %1339 = vmatpush.msra.mxu0 0.0
    %1340 = vmatpush.msra.mxu0 0.0
    %1341 = vmatpush.msra.mxu0 0.0
    %1342 = vmatpush.msra.mxu0 0.0
    %1343 = vmatpush.msra.mxu0 0.0
    %1344 = vmatpush.msra.mxu0 0.0
    %1345 = vmatpush.msra.mxu0 0.0
    %1346 = vmatpush.msra.mxu0 0.0
    %1347 = vmatpush.msra.mxu0 0.0
    %1348 = vmatpush.msra.mxu0 0.0
    %1349 = vmatpush.msra.mxu0 0.0
    %1350 = vmatpush.msra.mxu0 %v1068
    %1351 = vmatmul.f32.gmra.mxu0 %v1330
    %v1352 = vpop.f32.mrf.mxu0
    %v1353 = vadd.f32 0.0, %v1352
    %1354 = vmatmul.f32.gmra.mxu0 %v1333
    %v1355 = vpop.f32.mrf.mxu0
    %v1356 = vadd.f32 0.0, %v1355
    %1357 = vdwg.mxu0
    %v1359 = vsel %vm172, %v1171, 0
    %v1362 = vsel %vm172, %v1197, 0
    %1364 = vmatpush.msra.mxu0 0.0
    %1365 = vmatpush.msra.mxu0 0.0
    %1366 = vmatpush.msra.mxu0 0.0
    %1367 = vmatpush.msra.mxu0 0.0
    %1368 = vmatpush.msra.mxu0 0.0
    %1369 = vmatpush.msra.mxu0 0.0
    %1370 = vmatpush.msra.mxu0 0.0
    %1371 = vmatpush.msra.mxu0 0.0
    %1372 = vmatpush.msra.mxu0 0.0
    %1373 = vmatpush.msra.mxu0 0.0
    %1374 = vmatpush.msra.mxu0 0.0
    %1375 = vmatpush.msra.mxu0 0.0
    %1376 = vmatpush.msra.mxu0 0.0
    %1377 = vmatpush.msra.mxu0 0.0
    %1378 = vmatpush.msra.mxu0 0.0
    %1379 = vmatpush.msra.mxu0 %v1067
    %1380 = vmatmul.f32.gmra.mxu0 %v1359
    %v1381 = vpop.f32.mrf.mxu0
    %v1382 = vadd.f32 %v1353, %v1381
    %1383 = vmatmul.f32.gmra.mxu0 %v1362
    %v1384 = vpop.f32.mrf.mxu0
    %v1385 = vadd.f32 %v1356, %v1384
    %1386 = vdwg.mxu0
    %1387 = vrot.lane.b32.xlu0 %v1061, 112
    %v1388 = vpop.permute.xlu0 %1387
    %1389 = vrot.lane.b32.xlu0 %v1061, 80
    %v1390 = vpop.permute.xlu0 %1389
    %v1391 = vsel %vm172, %v1388, 0
    %v1393 = vsel %vm172, %v1390, 0
    %1395 = vmatpush.xpose.msra.mxu0 0.0
    %1396 = vmatpush.xpose.msra.mxu0 0.0
    %1397 = vmatpush.xpose.msra.mxu0 0.0
    %1398 = vmatpush.xpose.msra.mxu0 0.0
    %1399 = vmatpush.xpose.msra.mxu0 0.0
    %1400 = vmatpush.xpose.msra.mxu0 0.0
    %1401 = vmatpush.xpose.msra.mxu0 0.0
    %1402 = vmatpush.xpose.msra.mxu0 0.0
    %1403 = vmatpush.xpose.msra.mxu0 0.0
    %1404 = vmatpush.xpose.msra.mxu0 0.0
    %1405 = vmatpush.xpose.msra.mxu0 0.0
    %1406 = vmatpush.xpose.msra.mxu0 0.0
    %1407 = vmatpush.xpose.msra.mxu0 0.0
    %1408 = vmatpush.xpose.msra.mxu0 0.0
    %1409 = vmatpush.xpose.msra.mxu0 0.0
    %1410 = vmatpush.xpose.msra.mxu0 %v1393
    %1411 = vmatmul.f32.gmra.mxu0 %v1391
    %v1412 = vpop.f32.mrf.mxu0
    %v1413 = vadd.f32 %v126, %v1412
    %1414 = vdwg.mxu0
    %1415 = vrot.lane.b32.xlu0 %v1064, 112
    %v1416 = vpop.permute.xlu0 %1415
    %1417 = vrot.lane.b32.xlu0 %v1064, 80
    %v1418 = vpop.permute.xlu0 %1417
    %v1419 = vsel %vm172, %v1416, 0
    %v1421 = vsel %vm172, %v1418, 0
    %1423 = vmatpush.xpose.msra.mxu0 0.0
    %1424 = vmatpush.xpose.msra.mxu0 0.0
    %1425 = vmatpush.xpose.msra.mxu0 0.0
    %1426 = vmatpush.xpose.msra.mxu0 0.0
    %1427 = vmatpush.xpose.msra.mxu0 0.0
    %1428 = vmatpush.xpose.msra.mxu0 0.0
    %1429 = vmatpush.xpose.msra.mxu0 0.0
    %1430 = vmatpush.xpose.msra.mxu0 0.0
    %1431 = vmatpush.xpose.msra.mxu0 0.0
    %1432 = vmatpush.xpose.msra.mxu0 0.0
    %1433 = vmatpush.xpose.msra.mxu0 0.0
    %1434 = vmatpush.xpose.msra.mxu0 0.0
    %1435 = vmatpush.xpose.msra.mxu0 0.0
    %1436 = vmatpush.xpose.msra.mxu0 0.0
    %1437 = vmatpush.xpose.msra.mxu0 0.0
    %1438 = vmatpush.xpose.msra.mxu0 %v1421
    %1439 = vmatmul.f32.gmra.mxu0 %v1419
    %v1440 = vpop.f32.mrf.mxu0
    %v1441 = vadd.f32 %v127, %v1440
    %1442 = vdwg.mxu0
    %v1443 = vsel %vm172, %v1413, -inf
    %1444 = vmax.xlane.f32.xlu0 %v1443
    %v1445 = vpop.xlane.xlu0 %1444
    %v1446 = vsel %vm172, %v1441, -inf
    %1447 = vmax.xlane.f32.xlu0 %v1446
    %v1448 = vpop.xlane.xlu0 %1447
    %v1449 = vsub.f32 %v1413, %v1445
    %v1450 = vsub.f32 %v1441, %v1448
    %v1451 = vmul.f32 %v1449, 1.442695
    %v1452 = vpow.pop %v1451
    %v1453 = vmul.f32 %v1450, 1.442695
    %v1454 = vpow.pop %v1453
    %v1455 = vsel %vm172, %v1452, 0.0
    %1456 = vadd.xlane.f32.xlu0 %v1455
    %v1457 = vpop.xlane.xlu0 %1456
    %v1458 = vsel %vm172, %v1454, 0.0
    %1459 = vadd.xlane.f32.xlu0 %v1458
    %v1460 = vpop.xlane.xlu0 %1459
    %v1461 = vrcp.pop %v1457
    %v1462 = vrcp.pop %v1460
    %v1463 = vmul.f32 %v1452, %v1461
    %v1464 = vmul.f32 %v1454, %v1462
    %1465 = vrot.lane.b32.xlu0 %v1061, 48
    %v1466 = vpop.permute.xlu0 %1465
    %v1469 = vsel %vm172, %v1463, 0
    %1471 = vmatpush.msra.mxu0 0.0
    %1472 = vmatpush.msra.mxu0 0.0
    %1473 = vmatpush.msra.mxu0 0.0
    %1474 = vmatpush.msra.mxu0 0.0
    %1475 = vmatpush.msra.mxu0 0.0
    %1476 = vmatpush.msra.mxu0 0.0
    %1477 = vmatpush.msra.mxu0 0.0
    %1478 = vmatpush.msra.mxu0 0.0
    %1479 = vmatpush.msra.mxu0 0.0
    %1480 = vmatpush.msra.mxu0 0.0
    %1481 = vmatpush.msra.mxu0 0.0
    %1482 = vmatpush.msra.mxu0 0.0
    %1483 = vmatpush.msra.mxu0 0.0
    %1484 = vmatpush.msra.mxu0 0.0
    %1485 = vmatpush.msra.mxu0 0.0
    %1486 = vmatpush.msra.mxu0 %v1466
    %1487 = vmatmul.f32.gmra.mxu0 %v1469
    %v1488 = vpop.f32.mrf.mxu0
    %v1489 = vadd.f32 0.0, %v1488
    %1490 = vdwg.mxu0
    %1491 = vrot.lane.b32.xlu0 %v1064, 48
    %v1492 = vpop.permute.xlu0 %1491
    %v1495 = vsel %vm172, %v1464, 0
    %1497 = vmatpush.msra.mxu0 0.0
    %1498 = vmatpush.msra.mxu0 0.0
    %1499 = vmatpush.msra.mxu0 0.0
    %1500 = vmatpush.msra.mxu0 0.0
    %1501 = vmatpush.msra.mxu0 0.0
    %1502 = vmatpush.msra.mxu0 0.0
    %1503 = vmatpush.msra.mxu0 0.0
    %1504 = vmatpush.msra.mxu0 0.0
    %1505 = vmatpush.msra.mxu0 0.0
    %1506 = vmatpush.msra.mxu0 0.0
    %1507 = vmatpush.msra.mxu0 0.0
    %1508 = vmatpush.msra.mxu0 0.0
    %1509 = vmatpush.msra.mxu0 0.0
    %1510 = vmatpush.msra.mxu0 0.0
    %1511 = vmatpush.msra.mxu0 0.0
    %1512 = vmatpush.msra.mxu0 %v1492
    %1513 = vmatmul.f32.gmra.mxu0 %v1495
    %v1514 = vpop.f32.mrf.mxu0
    %v1515 = vadd.f32 0.0, %v1514
    %1516 = vdwg.mxu0
    %v1518 = vsel %vm172, %v1489, 0
    %v1521 = vsel %vm172, %v1515, 0
    %1523 = vmatpush.msra.mxu0 0.0
    %1524 = vmatpush.msra.mxu0 0.0
    %1525 = vmatpush.msra.mxu0 0.0
    %1526 = vmatpush.msra.mxu0 0.0
    %1527 = vmatpush.msra.mxu0 0.0
    %1528 = vmatpush.msra.mxu0 0.0
    %1529 = vmatpush.msra.mxu0 0.0
    %1530 = vmatpush.msra.mxu0 0.0
    %1531 = vmatpush.msra.mxu0 0.0
    %1532 = vmatpush.msra.mxu0 0.0
    %1533 = vmatpush.msra.mxu0 0.0
    %1534 = vmatpush.msra.mxu0 0.0
    %1535 = vmatpush.msra.mxu0 0.0
    %1536 = vmatpush.msra.mxu0 0.0
    %1537 = vmatpush.msra.mxu0 0.0
    %1538 = vmatpush.msra.mxu0 %v1069
    %1539 = vmatmul.f32.gmra.mxu0 %v1518
    %v1540 = vpop.f32.mrf.mxu0
    %v1541 = vadd.f32 0.0, %v1540
    %1542 = vmatmul.f32.gmra.mxu0 %v1521
    %v1543 = vpop.f32.mrf.mxu0
    %v1544 = vadd.f32 0.0, %v1543
    %1545 = vdwg.mxu0
    %v1546 = vadd.f32 %v1382, %v1541
    %v1547 = vadd.f32 %v1385, %v1544
    %1548 = vrot.lane.b32.xlu0 %v1061, 104
    %v1549 = vpop.permute.xlu0 %1548
    %1550 = vrot.lane.b32.xlu0 %v1061, 72
    %v1551 = vpop.permute.xlu0 %1550
    %v1552 = vsel %vm172, %v1549, 0
    %v1554 = vsel %vm172, %v1551, 0
    %1556 = vmatpush.xpose.msra.mxu0 0.0
    %1557 = vmatpush.xpose.msra.mxu0 0.0
    %1558 = vmatpush.xpose.msra.mxu0 0.0
    %1559 = vmatpush.xpose.msra.mxu0 0.0
    %1560 = vmatpush.xpose.msra.mxu0 0.0
    %1561 = vmatpush.xpose.msra.mxu0 0.0
    %1562 = vmatpush.xpose.msra.mxu0 0.0
    %1563 = vmatpush.xpose.msra.mxu0 0.0
    %1564 = vmatpush.xpose.msra.mxu0 0.0
    %1565 = vmatpush.xpose.msra.mxu0 0.0
    %1566 = vmatpush.xpose.msra.mxu0 0.0
    %1567 = vmatpush.xpose.msra.mxu0 0.0
    %1568 = vmatpush.xpose.msra.mxu0 0.0
    %1569 = vmatpush.xpose.msra.mxu0 0.0
    %1570 = vmatpush.xpose.msra.mxu0 0.0
    %1571 = vmatpush.xpose.msra.mxu0 %v1554
    %1572 = vmatmul.f32.gmra.mxu0 %v1552
    %v1573 = vpop.f32.mrf.mxu0
    %v1574 = vadd.f32 %v126, %v1573
    %1575 = vdwg.mxu0
    %1576 = vrot.lane.b32.xlu0 %v1064, 104
    %v1577 = vpop.permute.xlu0 %1576
    %1578 = vrot.lane.b32.xlu0 %v1064, 72
    %v1579 = vpop.permute.xlu0 %1578
    %v1580 = vsel %vm172, %v1577, 0
    %v1582 = vsel %vm172, %v1579, 0
    %1584 = vmatpush.xpose.msra.mxu0 0.0
    %1585 = vmatpush.xpose.msra.mxu0 0.0
    %1586 = vmatpush.xpose.msra.mxu0 0.0
    %1587 = vmatpush.xpose.msra.mxu0 0.0
    %1588 = vmatpush.xpose.msra.mxu0 0.0
    %1589 = vmatpush.xpose.msra.mxu0 0.0
    %1590 = vmatpush.xpose.msra.mxu0 0.0
    %1591 = vmatpush.xpose.msra.mxu0 0.0
    %1592 = vmatpush.xpose.msra.mxu0 0.0
    %1593 = vmatpush.xpose.msra.mxu0 0.0
    %1594 = vmatpush.xpose.msra.mxu0 0.0
    %1595 = vmatpush.xpose.msra.mxu0 0.0
    %1596 = vmatpush.xpose.msra.mxu0 0.0
    %1597 = vmatpush.xpose.msra.mxu0 0.0
    %1598 = vmatpush.xpose.msra.mxu0 0.0
    %1599 = vmatpush.xpose.msra.mxu0 %v1582
    %1600 = vmatmul.f32.gmra.mxu0 %v1580
    %v1601 = vpop.f32.mrf.mxu0
    %v1602 = vadd.f32 %v127, %v1601
    %1603 = vdwg.mxu0
    %v1604 = vsel %vm172, %v1574, -inf
    %1605 = vmax.xlane.f32.xlu0 %v1604
    %v1606 = vpop.xlane.xlu0 %1605
    %v1607 = vsel %vm172, %v1602, -inf
    %1608 = vmax.xlane.f32.xlu0 %v1607
    %v1609 = vpop.xlane.xlu0 %1608
    %v1610 = vsub.f32 %v1574, %v1606
    %v1611 = vsub.f32 %v1602, %v1609
    %v1612 = vmul.f32 %v1610, 1.442695
    %v1613 = vpow.pop %v1612
    %v1614 = vmul.f32 %v1611, 1.442695
    %v1615 = vpow.pop %v1614
    %v1616 = vsel %vm172, %v1613, 0.0
    %1617 = vadd.xlane.f32.xlu0 %v1616
    %v1618 = vpop.xlane.xlu0 %1617
    %v1619 = vsel %vm172, %v1615, 0.0
    %1620 = vadd.xlane.f32.xlu0 %v1619
    %v1621 = vpop.xlane.xlu0 %1620
    %v1622 = vrcp.pop %v1618
    %v1623 = vrcp.pop %v1621
    %v1624 = vmul.f32 %v1613, %v1622
    %v1625 = vmul.f32 %v1615, %v1623
    %1626 = vrot.lane.b32.xlu0 %v1061, 40
    %v1627 = vpop.permute.xlu0 %1626
    %v1630 = vsel %vm172, %v1624, 0
    %1632 = vmatpush.msra.mxu0 0.0
    %1633 = vmatpush.msra.mxu0 0.0
    %1634 = vmatpush.msra.mxu0 0.0
    %1635 = vmatpush.msra.mxu0 0.0
    %1636 = vmatpush.msra.mxu0 0.0
    %1637 = vmatpush.msra.mxu0 0.0
    %1638 = vmatpush.msra.mxu0 0.0
    %1639 = vmatpush.msra.mxu0 0.0
    %1640 = vmatpush.msra.mxu0 0.0
    %1641 = vmatpush.msra.mxu0 0.0
    %1642 = vmatpush.msra.mxu0 0.0
    %1643 = vmatpush.msra.mxu0 0.0
    %1644 = vmatpush.msra.mxu0 0.0
    %1645 = vmatpush.msra.mxu0 0.0
    %1646 = vmatpush.msra.mxu0 0.0
    %1647 = vmatpush.msra.mxu0 %v1627
    %1648 = vmatmul.f32.gmra.mxu0 %v1630
    %v1649 = vpop.f32.mrf.mxu0
    %v1650 = vadd.f32 0.0, %v1649
    %1651 = vdwg.mxu0
    %1652 = vrot.lane.b32.xlu0 %v1064, 40
    %v1653 = vpop.permute.xlu0 %1652
    %v1656 = vsel %vm172, %v1625, 0
    %1658 = vmatpush.msra.mxu0 0.0
    %1659 = vmatpush.msra.mxu0 0.0
    %1660 = vmatpush.msra.mxu0 0.0
    %1661 = vmatpush.msra.mxu0 0.0
    %1662 = vmatpush.msra.mxu0 0.0
    %1663 = vmatpush.msra.mxu0 0.0
    %1664 = vmatpush.msra.mxu0 0.0
    %1665 = vmatpush.msra.mxu0 0.0
    %1666 = vmatpush.msra.mxu0 0.0
    %1667 = vmatpush.msra.mxu0 0.0
    %1668 = vmatpush.msra.mxu0 0.0
    %1669 = vmatpush.msra.mxu0 0.0
    %1670 = vmatpush.msra.mxu0 0.0
    %1671 = vmatpush.msra.mxu0 0.0
    %1672 = vmatpush.msra.mxu0 0.0
    %1673 = vmatpush.msra.mxu0 %v1653
    %1674 = vmatmul.f32.gmra.mxu0 %v1656
    %v1675 = vpop.f32.mrf.mxu0
    %v1676 = vadd.f32 0.0, %v1675
    %1677 = vdwg.mxu0
    %v1679 = vsel %vm172, %v1650, 0
    %v1682 = vsel %vm172, %v1676, 0
    %1684 = vmatpush.msra.mxu0 0.0
    %1685 = vmatpush.msra.mxu0 0.0
    %1686 = vmatpush.msra.mxu0 0.0
    %1687 = vmatpush.msra.mxu0 0.0
    %1688 = vmatpush.msra.mxu0 0.0
    %1689 = vmatpush.msra.mxu0 0.0
    %1690 = vmatpush.msra.mxu0 0.0
    %1691 = vmatpush.msra.mxu0 0.0
    %1692 = vmatpush.msra.mxu0 0.0
    %1693 = vmatpush.msra.mxu0 0.0
    %1694 = vmatpush.msra.mxu0 0.0
    %1695 = vmatpush.msra.mxu0 0.0
    %1696 = vmatpush.msra.mxu0 0.0
    %1697 = vmatpush.msra.mxu0 0.0
    %1698 = vmatpush.msra.mxu0 0.0
    %1699 = vmatpush.msra.mxu0 %v1070
    %1700 = vmatmul.f32.gmra.mxu0 %v1679
    %v1701 = vpop.f32.mrf.mxu0
    %v1702 = vadd.f32 0.0, %v1701
    %1703 = vmatmul.f32.gmra.mxu0 %v1682
    %v1704 = vpop.f32.mrf.mxu0
    %v1705 = vadd.f32 0.0, %v1704
    %1706 = vdwg.mxu0
    %v1707 = vadd.f32 %v1546, %v1702
    %v1708 = vadd.f32 %v1547, %v1705
    %v1709 = vadd.f32 %v1025, %v1707
    %v1710 = vadd.f32 %v1026, %v1708
    %s1711 = scalar_lea.vmem %s7, 1
    %v1712 = vld [vmem:[%s1711] sm:$0x1]
    %v1714 = vperm.slane %v1712, 0
    %v1716 = vadd.f32 %v1709, %v1714
    %v1717 = vadd.f32 %v1710, %v1714
    %s1718 = scalar_lea.vmem %s8, 1
    %v1719 = vld [vmem:[%s1718] sm:$0x1]
    %s1720 = scalar_lea.vmem %s9, 1
    %v1721 = vld [vmem:[%s1720] sm:$0x1]
    %v1722 = vsel %vm64, %v1716, 0.0
    %1723 = vadd.xlane.f32.xlu0 %v1722
    %v1724 = vpop.xlane.xlu0 %1723
    %v1725 = vsel %vm64, %v1717, 0.0
    %1726 = vadd.xlane.f32.xlu0 %v1725
    %v1727 = vpop.xlane.xlu0 %1726
    %v1728 = vmul.f32 %v1724, %v77
    %v1729 = vmul.f32 %v1727, %v77
    %v1730 = vsub.f32 %v1716, %v1728
    %v1731 = vsub.f32 %v1717, %v1729
    %v1732 = vmul.f32 %v1730, %v1730
    %v1733 = vmul.f32 %v1731, %v1731
    %v1734 = vsel %vm64, %v1732, 0.0
    %1735 = vadd.xlane.f32.xlu0 %v1734
    %v1736 = vpop.xlane.xlu0 %1735
    %v1737 = vsel %vm64, %v1733, 0.0
    %1738 = vadd.xlane.f32.xlu0 %v1737
    %v1739 = vpop.xlane.xlu0 %1738
    %v1740 = vmul.f32 %v1736, %v77
    %v1741 = vmul.f32 %v1739, %v77
    %v1742 = vadd.f32 %v1740, 1e-12
    %v1743 = vadd.f32 %v1741, 1e-12
    %v1744 = vrsqrt.pop %v1742
    %v1745 = vmul.f32 %v1744, %v1742
    %v1746 = vmul.f32 %v1745, %v1744
    %v1747 = vmul.f32 0.5, %v1746
    %v1748 = vsub.f32 1.5, %v1747
    %v1749 = vmul.f32 %v1744, %v1748
    %vm1750 = vweird.f32 %v1742
    %vm1751 = vweird.f32 %v1744
    %vm1752 = vmor %vm1750, %vm1751
    %v1753 = vsel %vm1752, %v1744, %v1749
    %v1754 = vrsqrt.pop %v1743
    %v1755 = vmul.f32 %v1754, %v1743
    %v1756 = vmul.f32 %v1755, %v1754
    %v1757 = vmul.f32 0.5, %v1756
    %v1758 = vsub.f32 1.5, %v1757
    %v1759 = vmul.f32 %v1754, %v1758
    %vm1760 = vweird.f32 %v1743
    %vm1761 = vweird.f32 %v1754
    %vm1762 = vmor %vm1760, %vm1761
    %v1763 = vsel %vm1762, %v1754, %v1759
    %v1764 = vmul.f32 %v1730, %v1753
    %v1765 = vmul.f32 %v1731, %v1763
    %v1767 = vperm.slane %v1719, 0
    %v1769 = vmul.f32 %v1764, %v1767
    %v1770 = vmul.f32 %v1765, %v1767
    %v1772 = vperm.slane %v1721, 0
    %v1774 = vadd.f32 %v1769, %v1772
    %v1775 = vadd.f32 %v1770, %v1772
    %s1776 = scalar_lea.vmem %s10, 32
    %v1777 = vld [vmem:[%s1776] sm:$0xff]
    %v1778 = vld [vmem:[%s1776 + $0x8] sm:$0xff]
    %v1779 = vld [vmem:[%s1776 + $0x10] sm:$0xff]
    %v1780 = vld [vmem:[%s1776 + $0x18] sm:$0xff]
    %s1781 = scalar_lea.vmem %s11, 1
    %v1782 = vld [vmem:[%s1781] sm:$0x1]
    %v1784 = vperm.slane %v1782, 0
    %v1787 = vsel %vm64, %v1774, 0
    %v1790 = vsel %vm64, %v1775, 0
    %1792 = vmatpush.msra.mxu0 0.0
    %1793 = vmatpush.msra.mxu0 0.0
    %1794 = vmatpush.msra.mxu0 0.0
    %1795 = vmatpush.msra.mxu0 0.0
    %1796 = vmatpush.msra.mxu0 0.0
    %1797 = vmatpush.msra.mxu0 0.0
    %1798 = vmatpush.msra.mxu0 0.0
    %1799 = vmatpush.msra.mxu0 0.0
    %1800 = vmatpush.msra.mxu0 0.0
    %1801 = vmatpush.msra.mxu0 0.0
    %1802 = vmatpush.msra.mxu0 0.0
    %1803 = vmatpush.msra.mxu0 0.0
    %1804 = vmatpush.msra.mxu0 %v1780
    %1805 = vmatpush.msra.mxu0 %v1779
    %1806 = vmatpush.msra.mxu0 %v1778
    %1807 = vmatpush.msra.mxu0 %v1777
    %1808 = vmatmul.f32.gmra.mxu0 %v1787
    %v1809 = vpop.f32.mrf.mxu0
    %v1810 = vadd.f32 %v1784, %v1809
    %1811 = vmatmul.f32.gmra.mxu0 %v1790
    %v1812 = vpop.f32.mrf.mxu0
    %v1813 = vadd.f32 %v1784, %v1812
    %1814 = vdwg.mxu0
    %v1815 = vmul.f32 %v1810, 0.5
    %v1816 = vmul.f32 %v1813, 0.5
    %v1817 = vmul.f32 %v1810, 0.044715
    %v1818 = vmul.f32 %v1813, 0.044715
    %v1819 = vmul.f32 %v1817, %v1810
    %v1820 = vmul.f32 %v1818, %v1813
    %v1821 = vmul.f32 %v1819, %v1810
    %v1822 = vmul.f32 %v1820, %v1813
    %v1823 = vadd.f32 %v1810, %v1821
    %v1824 = vadd.f32 %v1813, %v1822
    %v1825 = vmul.f32 %v1823, 0.7978846
    %v1826 = vmul.f32 %v1824, 0.7978846
    %v1827 = vtanh.pop %v1825
    %v1828 = vtanh.pop %v1826
    %v1829 = vadd.f32 %v1827, 1.0
    %v1830 = vadd.f32 %v1828, 1.0
    %v1831 = vmul.f32 %v1815, %v1829
    %v1832 = vmul.f32 %v1816, %v1830
    %s1833 = scalar_lea.vmem %s12, 64
    %v1834 = vld [vmem:[%s1833] sm:$0xff]
    %v1835 = vld [vmem:[%s1833 + $0x8] sm:$0xff]
    %v1836 = vld [vmem:[%s1833 + $0x10] sm:$0xff]
    %v1837 = vld [vmem:[%s1833 + $0x18] sm:$0xff]
    %v1838 = vld [vmem:[%s1833 + $0x20] sm:$0xff]
    %v1839 = vld [vmem:[%s1833 + $0x28] sm:$0xff]
    %v1840 = vld [vmem:[%s1833 + $0x30] sm:$0xff]
    %v1841 = vld [vmem:[%s1833 + $0x38] sm:$0xff]
    %s1842 = scalar_lea.vmem %s13, 1
    %v1843 = vld [vmem:[%s1842] sm:$0x1]
    %v1845 = vperm.slane %v1843, 0
    %v1848 = vsel %vm939, %v1831, 0
    %v1851 = vsel %vm939, %v1832, 0
    %1853 = vmatpush.msra.mxu0 0.0
    %1854 = vmatpush.msra.mxu0 0.0
    %1855 = vmatpush.msra.mxu0 0.0
    %1856 = vmatpush.msra.mxu0 0.0
    %1857 = vmatpush.msra.mxu0 0.0
    %1858 = vmatpush.msra.mxu0 0.0
    %1859 = vmatpush.msra.mxu0 0.0
    %1860 = vmatpush.msra.mxu0 0.0
    %1861 = vmatpush.msra.mxu0 %v1841
    %1862 = vmatpush.msra.mxu0 %v1840
    %1863 = vmatpush.msra.mxu0 %v1839
    %1864 = vmatpush.msra.mxu0 %v1838
    %1865 = vmatpush.msra.mxu0 %v1837
    %1866 = vmatpush.msra.mxu0 %v1836
    %1867 = vmatpush.msra.mxu0 %v1835
    %1868 = vmatpush.msra.mxu0 %v1834
    %1869 = vmatmul.f32.gmra.mxu0 %v1848
    %v1870 = vpop.f32.mrf.mxu0
    %v1871 = vadd.f32 %v1845, %v1870
    %1872 = vmatmul.f32.gmra.mxu0 %v1851
    %v1873 = vpop.f32.mrf.mxu0
    %v1874 = vadd.f32 %v1845, %v1873
    %1875 = vdwg.mxu0
    %v1876 = vadd.f32 %v1774, %v1871
    %v1877 = vadd.f32 %v1775, %v1874
    %s1878 = scalar_lea.vmem %s14, 1
    %v1879 = vld [vmem:[%s1878] sm:$0x1]
    %s1880 = scalar_lea.vmem %s15, 1
    %v1881 = vld [vmem:[%s1880] sm:$0x1]
    %v1882 = vsel %vm64, %v1876, 0.0
    %1883 = vadd.xlane.f32.xlu0 %v1882
    %v1884 = vpop.xlane.xlu0 %1883
    %v1885 = vsel %vm64, %v1877, 0.0
    %1886 = vadd.xlane.f32.xlu0 %v1885
    %v1887 = vpop.xlane.xlu0 %1886
    %v1888 = vmul.f32 %v1884, %v77
    %v1889 = vmul.f32 %v1887, %v77
    %v1890 = vsub.f32 %v1876, %v1888
    %v1891 = vsub.f32 %v1877, %v1889
    %v1892 = vmul.f32 %v1890, %v1890
    %v1893 = vmul.f32 %v1891, %v1891
    %v1894 = vsel %vm64, %v1892, 0.0
    %1895 = vadd.xlane.f32.xlu0 %v1894
    %v1896 = vpop.xlane.xlu0 %1895
    %v1897 = vsel %vm64, %v1893, 0.0
    %1898 = vadd.xlane.f32.xlu0 %v1897
    %v1899 = vpop.xlane.xlu0 %1898
    %v1900 = vmul.f32 %v1896, %v77
    %v1901 = vmul.f32 %v1899, %v77
    %v1902 = vadd.f32 %v1900, 1e-12
    %v1903 = vadd.f32 %v1901, 1e-12
    %v1904 = vrsqrt.pop %v1902
    %v1905 = vmul.f32 %v1904, %v1902
    %v1906 = vmul.f32 %v1905, %v1904
    %v1907 = vmul.f32 0.5, %v1906
    %v1908 = vsub.f32 1.5, %v1907
    %v1909 = vmul.f32 %v1904, %v1908
    %vm1910 = vweird.f32 %v1902
    %vm1911 = vweird.f32 %v1904
    %vm1912 = vmor %vm1910, %vm1911
    %v1913 = vsel %vm1912, %v1904, %v1909
    %v1914 = vrsqrt.pop %v1903
    %v1915 = vmul.f32 %v1914, %v1903
    %v1916 = vmul.f32 %v1915, %v1914
    %v1917 = vmul.f32 0.5, %v1916
    %v1918 = vsub.f32 1.5, %v1917
    %v1919 = vmul.f32 %v1914, %v1918
    %vm1920 = vweird.f32 %v1903
    %vm1921 = vweird.f32 %v1914
    %vm1922 = vmor %vm1920, %vm1921
    %v1923 = vsel %vm1922, %v1914, %v1919
    %v1924 = vmul.f32 %v1890, %v1913
    %v1925 = vmul.f32 %v1891, %v1923
    %v1927 = vperm.slane %v1879, 0
    %v1929 = vmul.f32 %v1924, %v1927
    %v1930 = vmul.f32 %v1925, %v1927
    %v1932 = vperm.slane %v1881, 0
    %v1934 = vadd.f32 %v1929, %v1932
    %v1935 = vadd.f32 %v1930, %v1932
    %v1936 = vsel %vm64, %v1934, 0.0
    %v1937 = vrot.slane %v1936, 4
    %v1938 = vadd.f32 %v1936, %v1937
    %v1939 = vrot.slane %v1938, 2
    %v1940 = vadd.f32 %v1938, %v1939
    %v1941 = vrot.slane %v1940, 1
    %v1942 = vadd.f32 %v1940, %v1941
    %v1943 = vsel %vm64, %v1935, 0.0
    %v1944 = vrot.slane %v1943, 4
    %v1945 = vadd.f32 %v1943, %v1944
    %v1946 = vrot.slane %v1945, 2
    %v1947 = vadd.f32 %v1945, %v1946
    %v1948 = vrot.slane %v1947, 1
    %v1949 = vadd.f32 %v1947, %v1948
    %v1950 = vrcp.pop 8.0
    %v1951 = vmul.f32 8.0, %v1950
    %v1952 = vsub.f32 1.0, %v1951
    %v1953 = vmul.f32 %v1950, %v1952
    %v1954 = vadd.f32 %v1950, %v1953
    %vm1955 = vweird.f32 %v1950
    %v1956 = vsel %vm1955, %v1950, %v1954
    %v1957 = vmul.f32 %v1942, %v1956
    %v1958 = vmul.f32 %v1949, %v1956
    %v1959 = vld [vmem:[%s16] sm:$0xff]
    %v1960 = vld [vmem:[%s16 + $0x8] sm:$0xff]
    %v1961 = vld [vmem:[%s16 + $0x10] sm:$0xff]
    %v1962 = vld [vmem:[%s16 + $0x18] sm:$0xff]
    %v1963 = vld [vmem:[%s17] sm:$0x1]
    %v1965 = vperm.slane %v1963, 0
    %vm1969 = vcmask 1041409
    %v1970 = vsel %vm1969, %v1958, %v1957
    %v1971 = vsel %vm64, %v1970, 0
    %1973 = vmatpush.msra.mxu0 0.0
    %1974 = vmatpush.msra.mxu0 0.0
    %1975 = vmatpush.msra.mxu0 0.0
    %1976 = vmatpush.msra.mxu0 0.0
    %1977 = vmatpush.msra.mxu0 0.0
    %1978 = vmatpush.msra.mxu0 0.0
    %1979 = vmatpush.msra.mxu0 0.0
    %1980 = vmatpush.msra.mxu0 0.0
    %1981 = vmatpush.msra.mxu0 0.0
    %1982 = vmatpush.msra.mxu0 0.0
    %1983 = vmatpush.msra.mxu0 0.0
    %1984 = vmatpush.msra.mxu0 0.0
    %1985 = vmatpush.msra.mxu0 %v1962
    %1986 = vmatpush.msra.mxu0 %v1961
    %1987 = vmatpush.msra.mxu0 %v1960
    %1988 = vmatpush.msra.mxu0 %v1959
    %1989 = vmatmul.f32.gmra.mxu0 %v1971
    %v1990 = vpop.f32.mrf.mxu0
    %v1991 = vadd.f32 %v1965, %v1990
    %1992 = vdwg.mxu0
    %1993 = vst [vmem:[#allocation2] sm:$0x3] %v1991
    // Predicated region
    $region74: #{bert_classifier_forward.1} parent=1 // pred_check
      _
    $region75: #{bert_classifier_forward.1} parent=1 // pred_check_branch
      %1995 = sbr.rel (0) target = $region77
    $region76: #{bert_classifier_forward.1} parent=1 // pred_region
      %1997 = vsyncadd [#allocation3], 0
      %s1999 = sshll.u32 [#allocation2], 4
      %s2000 = int_to_ptr.vmem [resolvable:$true] %s1999
      %s2001 = sshll.u32 %s18, 4
      %s2002 = int_to_ptr.hbm [resolvable:$true] %s2001
      %2004 = dma.vmem_to_hbm [thread:$0]  %s2000, 32, %s2002, [#allocation3]
    $region77: #{bert_classifier_forward.1} parent=1 // pred_fallthru
      _
    // Predicated region
    $region78: #{bert_classifier_forward.1} parent=1 // pred_check
      _
    $region79: #{bert_classifier_forward.1} parent=1 // pred_check_branch
      %2006 = sbr.rel (0) target = $region81
    $region80: #{bert_classifier_forward.1} parent=1 // pred_region
      %2008 = dma.done [#allocation3], 32
    $region81: #{bert_classifier_forward.1} parent=1 // pred_fallthru
      _
    %2009 = vsyncpa [#allocation3], 1

</llo_original>
